<compile_context>
chip_gen: v7x
topology: tpu7x:2x2x1
jax: 0.10.0
libtpu: 0.0.40
codegen_flags: <defaults>
</compile_context>

<pallas_src>
import functools
import math

import jax
import jax.numpy as jnp
from jax.experimental import pallas as pl
from jax.experimental.pallas import tpu as pltpu


def _layer_norm(z, gamma, beta, eps=1e-5):
    mu = jnp.mean(z, axis=-1, keepdims=True)
    var = jnp.mean(jnp.square(z - mu), axis=-1, keepdims=True)
    return (z - mu) * jax.lax.rsqrt(var + eps) * gamma + beta


# ----------------------------------------------------------------------------
# Pallas kernel: ONE encoder block for one batch tile (grid step).
# ----------------------------------------------------------------------------
def encoder_block_kernel(x_ref, bias_ref,
                         wq_ref, bq_ref, wk_ref, bk_ref, wv_ref, bv_ref,
                         wo_ref, bo_ref, gamma_ref, beta_ref,
                         w1_ref, b1_ref, w2_ref, b2_ref,
                         out_ref, acc_ref, *,
                         num_heads, key_dim, query_dim, value_dim,
                         exact_softmax=False):
    blk = pl.program_id(1)
    n_blocks = pl.num_programs(1)
    BT, S, E = x_ref.shape
    R = BT * S
    H, Dq, Dk, Dv = num_heads, query_dim, key_dim, value_dim

    # Residual-stream carry lives in f32 VMEM scratch across the block axis.
    @pl.when(blk == 0)
    def _():
        acc_ref[...] = x_ref[...].astype(jnp.float32)

    x = acc_ref[...].reshape(R, E)                    # [rows, E] f32

    # Current block's weights / params, loaded once into locals.
    wq = wq_ref[0]; bq = bq_ref[0]                    # 1/sqrt(dk) pre-folded
    wk = wk_ref[0]; bk = bk_ref[0]
    wv = wv_ref[0]; bv = bv_ref[0]
    wo = wo_ref[0]; bo = bo_ref[0]                    # [H*Dv, E] fused out-proj
    gamma = gamma_ref[0]; beta = beta_ref[0]          # shared LayerNorm params
    w1 = w1_ref[0]; b1 = b1_ref[0]
    w2 = w2_ref[0]; b2 = b2_ref[0]

    # Additive mask bias, broadcast ONCE (hoisted out of the head loop).
    bias = jnp.broadcast_to(bias_ref[...].astype(jnp.float32), (BT, S, S))

    # --- Multi-head attention ------------------------------------------------
    xb = x.astype(jnp.bfloat16)                       # single cast per block
    q = jnp.dot(xb, wq, preferred_element_type=jnp.float32) + bq   # [R, H*Dq]
    k = jnp.dot(xb, wk, preferred_element_type=jnp.float32) + bk   # [R, H*Dk]
    v = jnp.dot(xb, wv, preferred_element_type=jnp.float32) + bv   # [R, H*Dv]

    q3 = q.reshape(BT, S, H * Dq).astype(jnp.bfloat16)             # leading split
    k3 = k.reshape(BT, S, H * Dk).astype(jnp.bfloat16)
    v3 = v.reshape(BT, S, H * Dv).astype(jnp.bfloat16)

    head_outs = []
    for h in range(H):                                # trace-time loop; MXU work
        qh = q3[:, :, h * Dq:(h + 1) * Dq]            #   is batched over BT.
        kh = k3[:, :, h * Dk:(h + 1) * Dk]
        vh = v3[:, :, h * Dv:(h + 1) * Dv]
        s = jnp.einsum('bqd,bkd->bqk', qh, kh,
                       preferred_element_type=jnp.float32)         # [BT,S,S]
        s = s + bias
        s = s - jnp.max(s, axis=-1, keepdims=True)
        p = jnp.exp(s)
        denom = jnp.sum(p, axis=-1, keepdims=True)
        if exact_softmax:
            p = p / denom                             # exact-parity fallback
        else:
            p = p * pl.reciprocal(denom, approx=True) # EUP slot
        head_outs.append(
            jnp.einsum('bqk,bkd->bqd', p.astype(jnp.bfloat16), vh,
                       preferred_element_type=jnp.float32))        # [BT,S,Dv]

    # Assemble all heads once and do ONE fused output projection (K = H*Dv).
    o = jnp.concatenate(head_outs, axis=-1).reshape(R, H * Dv)
    attn = jnp.dot(o.astype(jnp.bfloat16), wo,
                   preferred_element_type=jnp.float32) + bo        # [R, E]

    # --- Add & (shared) LayerNorm -------------------------------------------
    h1 = _layer_norm(x + attn, gamma, beta)

    # --- Feed-forward: Linear(E->4E) -> ReLU -> Linear(4E->E) ----------------
    ff = jnp.dot(h1.astype(jnp.bfloat16), w1,
                 preferred_element_type=jnp.float32) + b1
    ff = jnp.maximum(ff, 0.0)
    ff = jnp.dot(ff.astype(jnp.bfloat16), w2,
                 preferred_element_type=jnp.float32) + b2

    y = _layer_norm(h1 + ff, gamma, beta)

    acc_ref[...] = y.reshape(BT, S, E)

    # Single activation writeback per batch tile, after the last block.
    # NOTE: at toy E=32 (<128 lanes) this is a masked partial store; realistic
    # E (multiple of 128) gives a lane-dense vst.
    @pl.when(blk == n_blocks - 1)
    def _():
        out_ref[...] = acc_ref[...].astype(out_ref.dtype)


# ----------------------------------------------------------------------------
# Generation-aware sizing.
# ----------------------------------------------------------------------------
def _tpu_generation_params():
    """Returns (target_rows, vmem_limit_bytes) tuned per TPU generation."""
    kind = ""
    try:
        kind = jax.devices()[0].device_kind.lower()
    except Exception:
        pass
    vmem_phys = None
    try:
        vmem_phys = int(pltpu.get_tpu_info().vmem_capacity_bytes)
    except Exception:
        pass
    if vmem_phys is None:
        vmem_phys = (64 if ("v7" in kind or "7x" in kind) else 128) * 1024 * 1024
    is_v5e = ("v5 lite" in kind) or ("v5e" in kind) or ("v5litepod" in kind)
    # v5e: 4x128x128 MXU + smaller scoped VMEM -> ~128-256 row tiles;
    # v6e/v7x: 2x256x256 MXU -> larger tiles.
    target_rows = 256 if is_v5e else 512
    vmem_limit = max(32 * 1024 * 1024,
                     min(vmem_phys * 3 // 4, 100 * 1024 * 1024))
    return target_rows, vmem_limit


def pick_batch_tile(batch, seq, target_rows):
    """Largest divisor of `batch` with bt*seq <= target_rows, then shrunk so the
    batch-tile grid axis has >=2 steps when possible (megacore on v7x +
    activation DMA/compute overlap)."""
    best = 1
    for cand in range(1, batch + 1):
        if batch % cand == 0 and cand * seq <= max(target_rows, seq):
            best = cand
    while best > 1 and batch // best < 2:
        best = max(d for d in range(1, best) if batch % d == 0)
    return best


# ----------------------------------------------------------------------------
# Wrapper: one pallas_call over (batch tiles, blocks).
# ----------------------------------------------------------------------------
def encoder_stack_apply(x, mask_bias, stacked_params, *, num_heads, key_dim,
                        query_dim, value_dim, batch_tile, vmem_limit_bytes):
    B, S, E = x.shape
    num_blocks = stacked_params[0].shape[0]
    kernel = functools.partial(
        encoder_block_kernel,
        num_heads=num_heads, key_dim=key_dim,
        query_dim=query_dim, value_dim=value_dim)

    # Per-block weight streaming: each stacked param is indexed by the block
    # grid axis -> only current (+ prefetched next) block's weights in VMEM.
    weight_specs = [
        pl.BlockSpec((1,) + p.shape[1:],
                     lambda i, b, _n=p.ndim - 1: (b,) + (0,) * _n)
        for p in stacked_params
    ]
    in_specs = (
        [pl.BlockSpec((batch_tile, S, E), lambda i, b: (i, 0, 0)),   # activations
         pl.BlockSpec((batch_tile, 1, S), lambda i, b: (i, 0, 0))]   # mask bias
        + weight_specs)

    return pl.pallas_call(
        kernel,
        out_shape=jax.ShapeDtypeStruct((B, S, E), x.dtype),
        grid=(B // batch_tile, num_blocks),
        in_specs=in_specs,
        out_specs=pl.BlockSpec((batch_tile, S, E), lambda i, b: (i, 0, 0)),
        scratch_shapes=[pltpu.VMEM((batch_tile, S, E), jnp.float32)],
        compiler_params=pltpu.CompilerParams(
            dimension_semantics=("parallel", "arbitrary"),
            vmem_limit_bytes=vmem_limit_bytes),
    )(x, mask_bias, *stacked_params)


# ----------------------------------------------------------------------------
# Parameter initialization (deterministic, synthetic) + packing for the kernel.
# ----------------------------------------------------------------------------
def init_block_params(key, embed, num_heads, key_dim, query_dim, value_dim):
    ks = jax.random.split(key, 5)
    s = 0.05
    wq = jax.random.normal(ks[0], (embed, num_heads * query_dim), jnp.float32) * s
    wk = jax.random.normal(ks[1], (embed, num_heads * key_dim), jnp.float32) * s
    wv = jax.random.normal(ks[2], (embed, num_heads * value_dim), jnp.float32) * s
    wo = jax.random.normal(ks[3], (num_heads * value_dim, embed), jnp.float32) * s
    bq = jnp.zeros((1, num_heads * query_dim), jnp.float32)
    bk = jnp.zeros((1, num_heads * key_dim), jnp.float32)
    bv = jnp.zeros((1, num_heads * value_dim), jnp.float32)
    bo = jnp.zeros((1, embed), jnp.float32)
    gamma = jnp.ones((1, embed), jnp.float32)
    beta = jnp.zeros((1, embed), jnp.float32)
    k1, k2 = jax.random.split(ks[4])
    w1 = jax.random.normal(k1, (embed, 4 * embed), jnp.float32) * s
    b1 = jnp.zeros((1, 4 * embed), jnp.float32)
    w2 = jax.random.normal(k2, (4 * embed, embed), jnp.float32) * s
    b2 = jnp.zeros((1, embed), jnp.float32)
    return (wq, bq, wk, bk, wv, bv, wo, bo, gamma, beta, w1, b1, w2, b2)


def init_embedding_params(key, vocab_size, max_length, embed):
    k1, k2 = jax.random.split(key)
    tok_emb = jax.random.normal(k1, (vocab_size, embed), jnp.float32) * 0.05
    pos_emb = jax.random.normal(k2, (max_length, embed), jnp.float32) * 0.05
    return tok_emb, pos_emb


def pack_block_params(block_params_list, *, key_dim):
    """Stack per-block params along a leading block axis; fold 1/sqrt(dk) into
    Wq/bq; cast matmul weights to bf16 (f32 accumulation in the kernel).
    Biases / LayerNorm params stay f32.  Wo is kept [H*Dv, E] for the single
    fused output-projection matmul."""
    # TODO(synk): on v7x, fp8 weight storage (int8 on v5e/v6e) would halve
    #   weight VMEM / double MXU rate; kept bf16 here for simplicity.
    (wq, bq, wk, bk, wv, bv, wo, bo, gamma, beta, w1, b1, w2, b2) = [
        jnp.stack(t, axis=0) for t in zip(*block_params_list)]
    scale = 1.0 / math.sqrt(key_dim)
    wq = (wq * scale).astype(jnp.bfloat16)
    bq = bq * scale
    wk = wk.astype(jnp.bfloat16)
    wv = wv.astype(jnp.bfloat16)
    wo = wo.astype(jnp.bfloat16)
    w1 = w1.astype(jnp.bfloat16)
    w2 = w2.astype(jnp.bfloat16)
    return (wq, bq, wk, bk, wv, bv, wo, bo, gamma, beta, w1, b1, w2, b2)


# ----------------------------------------------------------------------------
# Full Encoder forward.
# ----------------------------------------------------------------------------
def encoder_forward(token_ids, mask, emb_params, stacked_block_params, *,
                    num_heads, key_dim, query_dim, value_dim):
    tok_emb, pos_emb = emb_params
    B, S = token_ids.shape
    # Glue: token + position embedding lookup (gather) outside the kernel.
    x = jnp.take(tok_emb, token_ids, axis=0) + pos_emb[:S][None, :, :]
    # Additive attention-mask bias, computed once: 0 where attendable, -1e9 masked.
    mask_bias = (mask.astype(jnp.float32) - 1.0) * 1e9
    target_rows, vmem_limit = _tpu_generation_params()
    bt = pick_batch_tile(B, S, target_rows)
    return encoder_stack_apply(x, mask_bias, stacked_block_params,
                               num_heads=num_heads, key_dim=key_dim,
                               query_dim=query_dim, value_dim=value_dim,
                               batch_tile=bt, vmem_limit_bytes=vmem_limit)


# ----------------------------------------------------------------------------
# Main
# ----------------------------------------------------------------------------
if __name__ == "__main__":
    # Small config consistent with the module's constructor signature.
    B, S = 2, 8
    src_max_length = 16
    embedding_dim = 32
    key_dim = query_dim = value_dim = 8
    src_vocab_size = 50
    dropout_rate = 0.1          # unused in eval-mode forward
    num_blocks = 2
    num_heads = 4

    root = jax.random.PRNGKey(0)
    k_emb, k_ids, *k_blocks = jax.random.split(root, 2 + num_blocks)

    emb_params = init_embedding_params(k_emb, src_vocab_size, src_max_length,
                                       embedding_dim)
    block_params_list = [
        init_block_params(k, embedding_dim, num_heads, key_dim, query_dim, value_dim)
        for k in k_blocks
    ]
    stacked_block_params = pack_block_params(block_params_list, key_dim=key_dim)

    token_ids = jax.random.randint(k_ids, (B, S), 0, src_vocab_size, dtype=jnp.int32)
    # mask: 1.0 = attend, 0.0 = masked key position (last position masked).
    mask = jnp.ones((B, 1, S), jnp.float32).at[:, :, -1].set(0.0)

    out = encoder_forward(token_ids, mask, emb_params, stacked_block_params,
                          num_heads=num_heads, key_dim=key_dim,
                          query_dim=query_dim, value_dim=value_dim)
    out = jax.block_until_ready(out)
    assert out.shape == (B, S, embedding_dim)
    print("KERNEL_OK")
</pallas_src>

<mosaic_0001>
module attributes {stable_mosaic.version = 11 : i64} {
  func.func @encoder_block_kernel(%arg0: i32, %arg1: i32, %arg2: memref<1x8x32xf32, #tpu.memory_space<vmem>>, %arg3: memref<1x1x8xf32, #tpu.memory_space<vmem>>, %arg4: memref<1x32x32xbf16, #tpu.memory_space<vmem>>, %arg5: memref<1x1x32xf32, #tpu.memory_space<vmem>>, %arg6: memref<1x32x32xbf16, #tpu.memory_space<vmem>>, %arg7: memref<1x1x32xf32, #tpu.memory_space<vmem>>, %arg8: memref<1x32x32xbf16, #tpu.memory_space<vmem>>, %arg9: memref<1x1x32xf32, #tpu.memory_space<vmem>>, %arg10: memref<1x32x32xbf16, #tpu.memory_space<vmem>>, %arg11: memref<1x1x32xf32, #tpu.memory_space<vmem>>, %arg12: memref<1x1x32xf32, #tpu.memory_space<vmem>>, %arg13: memref<1x1x32xf32, #tpu.memory_space<vmem>>, %arg14: memref<1x32x128xbf16, #tpu.memory_space<vmem>>, %arg15: memref<1x1x128xf32, #tpu.memory_space<vmem>>, %arg16: memref<1x128x32xbf16, #tpu.memory_space<vmem>>, %arg17: memref<1x1x32xf32, #tpu.memory_space<vmem>>, %arg18: memref<1x8x32xf32, #tpu.memory_space<vmem>>, %arg19: memref<1x8x32xf32, #tpu.memory_space<vmem>>) attributes {dimension_semantics = [#tpu.dimension_semantics<parallel>, #tpu.dimension_semantics<arbitrary>], iteration_bounds = array<i64: 2, 2>, scalar_prefetch = 0 : i64, scratch_operands = 1 : i64, tpu.core_type = #tpu.core_type<tc>, window_params = [{transform_indices = @transform_0, window_bounds = array<i64: 1, 8, 32>}, {transform_indices = @transform_1, window_bounds = array<i64: 1, 1, 8>}, {transform_indices = @transform_2, window_bounds = array<i64: 1, 32, 32>}, {transform_indices = @transform_3, window_bounds = array<i64: 1, 1, 32>}, {transform_indices = @transform_4, window_bounds = array<i64: 1, 32, 32>}, {transform_indices = @transform_5, window_bounds = array<i64: 1, 1, 32>}, {transform_indices = @transform_6, window_bounds = array<i64: 1, 32, 32>}, {transform_indices = @transform_7, window_bounds = array<i64: 1, 1, 32>}, {transform_indices = @transform_8, window_bounds = array<i64: 1, 32, 32>}, {transform_indices = @transform_9, window_bounds = array<i64: 1, 1, 32>}, {transform_indices = @transform_10, window_bounds = array<i64: 1, 1, 32>}, {transform_indices = @transform_11, window_bounds = array<i64: 1, 1, 32>}, {transform_indices = @transform_12, window_bounds = array<i64: 1, 32, 128>}, {transform_indices = @transform_13, window_bounds = array<i64: 1, 1, 128>}, {transform_indices = @transform_14, window_bounds = array<i64: 1, 128, 32>}, {transform_indices = @transform_15, window_bounds = array<i64: 1, 1, 32>}, {transform_indices = @transform_16, window_bounds = array<i64: 1, 8, 32>}]} {
    %c0_i32 = arith.constant 0 : i32
    %0 = arith.cmpi eq, %arg1, %c0_i32 : i32
    %1 = arith.extui %0 : i1 to i32
    %c0_i32_0 = arith.constant 0 : i32
    %2 = arith.cmpi ne, %1, %c0_i32_0 : i32
    scf.if %2 {
      %c0_84 = arith.constant 0 : index
      %c0_85 = arith.constant 0 : index
      %c0_86 = arith.constant 0 : index
      %187 = vector.load %arg2[%c0_84, %c0_85, %c0_86] : memref<1x8x32xf32, #tpu.memory_space<vmem>>, vector<1x8x32xf32>
      %c0_87 = arith.constant 0 : index
      %c0_88 = arith.constant 0 : index
      %c0_89 = arith.constant 0 : index
      %188 = vector.load %arg19[%c0_87, %c0_88, %c0_89] : memref<1x8x32xf32, #tpu.memory_space<vmem>>, vector<1x8x32xf32>
      tpu.vector_store %arg19[%c0_87, %c0_88, %c0_89], %187 {strides = array<i32>} : memref<1x8x32xf32, #tpu.memory_space<vmem>>, vector<1x8x32xf32>,
    } else {
    }
    %c0 = arith.constant 0 : index
    %c0_1 = arith.constant 0 : index
    %c0_2 = arith.constant 0 : index
    %3 = vector.load %arg19[%c0, %c0_1, %c0_2] : memref<1x8x32xf32, #tpu.memory_space<vmem>>, vector<1x8x32xf32>
    %4 = vector.shape_cast %3 : vector<1x8x32xf32> to vector<8x32xf32>
    %c0_3 = arith.constant 0 : index
    %c0_4 = arith.constant 0 : index
    %c0_5 = arith.constant 0 : index
    %5 = vector.load %arg4[%c0_3, %c0_4, %c0_5] : memref<1x32x32xbf16, #tpu.memory_space<vmem>>, vector<1x32x32xbf16>
    %6 = vector.shape_cast %5 : vector<1x32x32xbf16> to vector<32x32xbf16>
    %c0_6 = arith.constant 0 : index
    %c0_7 = arith.constant 0 : index
    %c0_8 = arith.constant 0 : index
    %7 = vector.load %arg5[%c0_6, %c0_7, %c0_8] : memref<1x1x32xf32, #tpu.memory_space<vmem>>, vector<1x1x32xf32>
    %8 = vector.shape_cast %7 : vector<1x1x32xf32> to vector<1x32xf32>
    %c0_9 = arith.constant 0 : index
    %c0_10 = arith.constant 0 : index
    %c0_11 = arith.constant 0 : index
    %9 = vector.load %arg6[%c0_9, %c0_10, %c0_11] : memref<1x32x32xbf16, #tpu.memory_space<vmem>>, vector<1x32x32xbf16>
    %10 = vector.shape_cast %9 : vector<1x32x32xbf16> to vector<32x32xbf16>
    %c0_12 = arith.constant 0 : index
    %c0_13 = arith.constant 0 : index
    %c0_14 = arith.constant 0 : index
    %11 = vector.load %arg7[%c0_12, %c0_13, %c0_14] : memref<1x1x32xf32, #tpu.memory_space<vmem>>, vector<1x1x32xf32>
    %12 = vector.shape_cast %11 : vector<1x1x32xf32> to vector<1x32xf32>
    %c0_15 = arith.constant 0 : index
    %c0_16 = arith.constant 0 : index
    %c0_17 = arith.constant 0 : index
    %13 = vector.load %arg8[%c0_15, %c0_16, %c0_17] : memref<1x32x32xbf16, #tpu.memory_space<vmem>>, vector<1x32x32xbf16>
    %14 = vector.shape_cast %13 : vector<1x32x32xbf16> to vector<32x32xbf16>
    %c0_18 = arith.constant 0 : index
    %c0_19 = arith.constant 0 : index
    %c0_20 = arith.constant 0 : index
    %15 = vector.load %arg9[%c0_18, %c0_19, %c0_20] : memref<1x1x32xf32, #tpu.memory_space<vmem>>, vector<1x1x32xf32>
    %16 = vector.shape_cast %15 : vector<1x1x32xf32> to vector<1x32xf32>
    %c0_21 = arith.constant 0 : index
    %c0_22 = arith.constant 0 : index
    %c0_23 = arith.constant 0 : index
    %17 = vector.load %arg10[%c0_21, %c0_22, %c0_23] : memref<1x32x32xbf16, #tpu.memory_space<vmem>>, vector<1x32x32xbf16>
    %18 = vector.shape_cast %17 : vector<1x32x32xbf16> to vector<32x32xbf16>
    %c0_24 = arith.constant 0 : index
    %c0_25 = arith.constant 0 : index
    %c0_26 = arith.constant 0 : index
    %19 = vector.load %arg11[%c0_24, %c0_25, %c0_26] : memref<1x1x32xf32, #tpu.memory_space<vmem>>, vector<1x1x32xf32>
    %20 = vector.shape_cast %19 : vector<1x1x32xf32> to vector<1x32xf32>
    %c0_27 = arith.constant 0 : index
    %c0_28 = arith.constant 0 : index
    %c0_29 = arith.constant 0 : index
    %21 = vector.load %arg12[%c0_27, %c0_28, %c0_29] : memref<1x1x32xf32, #tpu.memory_space<vmem>>, vector<1x1x32xf32>
    %22 = vector.shape_cast %21 : vector<1x1x32xf32> to vector<1x32xf32>
    %c0_30 = arith.constant 0 : index
    %c0_31 = arith.constant 0 : index
    %c0_32 = arith.constant 0 : index
    %23 = vector.load %arg13[%c0_30, %c0_31, %c0_32] : memref<1x1x32xf32, #tpu.memory_space<vmem>>, vector<1x1x32xf32>
    %24 = vector.shape_cast %23 : vector<1x1x32xf32> to vector<1x32xf32>
    %c0_33 = arith.constant 0 : index
    %c0_34 = arith.constant 0 : index
    %c0_35 = arith.constant 0 : index
    %25 = vector.load %arg14[%c0_33, %c0_34, %c0_35] : memref<1x32x128xbf16, #tpu.memory_space<vmem>>, vector<1x32x128xbf16>
    %26 = vector.shape_cast %25 : vector<1x32x128xbf16> to vector<32x128xbf16>
    %c0_36 = arith.constant 0 : index
    %c0_37 = arith.constant 0 : index
    %c0_38 = arith.constant 0 : index
    %27 = vector.load %arg15[%c0_36, %c0_37, %c0_38] : memref<1x1x128xf32, #tpu.memory_space<vmem>>, vector<1x1x128xf32>
    %28 = vector.shape_cast %27 : vector<1x1x128xf32> to vector<1x128xf32>
    %c0_39 = arith.constant 0 : index
    %c0_40 = arith.constant 0 : index
    %c0_41 = arith.constant 0 : index
    %29 = vector.load %arg16[%c0_39, %c0_40, %c0_41] : memref<1x128x32xbf16, #tpu.memory_space<vmem>>, vector<1x128x32xbf16>
    %30 = vector.shape_cast %29 : vector<1x128x32xbf16> to vector<128x32xbf16>
    %c0_42 = arith.constant 0 : index
    %c0_43 = arith.constant 0 : index
    %c0_44 = arith.constant 0 : index
    %31 = vector.load %arg17[%c0_42, %c0_43, %c0_44] : memref<1x1x32xf32, #tpu.memory_space<vmem>>, vector<1x1x32xf32>
    %32 = vector.shape_cast %31 : vector<1x1x32xf32> to vector<1x32xf32>
    %c0_45 = arith.constant 0 : index
    %c0_46 = arith.constant 0 : index
    %c0_47 = arith.constant 0 : index
    %33 = vector.load %arg3[%c0_45, %c0_46, %c0_47] : memref<1x1x8xf32, #tpu.memory_space<vmem>>, vector<1x1x8xf32>
    %34 = vector.shape_cast %33 : vector<1x1x8xf32> to vector<1x1x8xf32>
    %35 = vector.broadcast %34 : vector<1x1x8xf32> to vector<1x8x8xf32>
    %36 = arith.truncf %4 : vector<8x32xf32> to vector<8x32xbf16>
    %cst = arith.constant dense<0.000000e+00> : vector<8x32xf32>
    %37 = tpu.matmul %36, %6, %cst {dimension_numbers = #tpu.dot_dimension_numbers<[1], [0], [0], [1], [0, 0, 1, 1], [], []>} : vector<8x32xbf16>, vector<32x32xbf16>, vector<8x32xf32> -> vector<8x32xf32>
    %38 = vector.broadcast %8 : vector<1x32xf32> to vector<8x32xf32>
    %39 = arith.addf %37, %38 : vector<8x32xf32>
    %cst_48 = arith.constant dense<0.000000e+00> : vector<8x32xf32>
    %40 = tpu.matmul %36, %10, %cst_48 {dimension_numbers = #tpu.dot_dimension_numbers<[1], [0], [0], [1], [0, 0, 1, 1], [], []>} : vector<8x32xbf16>, vector<32x32xbf16>, vector<8x32xf32> -> vector<8x32xf32>
    %41 = vector.broadcast %12 : vector<1x32xf32> to vector<8x32xf32>
    %42 = arith.addf %40, %41 : vector<8x32xf32>
    %cst_49 = arith.constant dense<0.000000e+00> : vector<8x32xf32>
    %43 = tpu.matmul %36, %14, %cst_49 {dimension_numbers = #tpu.dot_dimension_numbers<[1], [0], [0], [1], [0, 0, 1, 1], [], []>} : vector<8x32xbf16>, vector<32x32xbf16>, vector<8x32xf32> -> vector<8x32xf32>
    %44 = vector.broadcast %16 : vector<1x32xf32> to vector<8x32xf32>
    %45 = arith.addf %43, %44 : vector<8x32xf32>
    %46 = vector.shape_cast %39 : vector<8x32xf32> to vector<1x8x32xf32>
    %47 = arith.truncf %46 : vector<1x8x32xf32> to vector<1x8x32xbf16>
    %48 = vector.shape_cast %42 : vector<8x32xf32> to vector<1x8x32xf32>
    %49 = arith.truncf %48 : vector<1x8x32xf32> to vector<1x8x32xbf16>
    %50 = vector.shape_cast %45 : vector<8x32xf32> to vector<1x8x32xf32>
    %51 = arith.truncf %50 : vector<1x8x32xf32> to vector<1x8x32xbf16>
    %52 = vector.extract_strided_slice %47 {offsets = [0, 0, 0], sizes = [1, 8, 8], strides = [1, 1, 1]} : vector<1x8x32xbf16> to vector<1x8x8xbf16>
    %53 = vector.extract_strided_slice %49 {offsets = [0, 0, 0], sizes = [1, 8, 8], strides = [1, 1, 1]} : vector<1x8x32xbf16> to vector<1x8x8xbf16>
    %54 = vector.extract_strided_slice %51 {offsets = [0, 0, 0], sizes = [1, 8, 8], strides = [1, 1, 1]} : vector<1x8x32xbf16> to vector<1x8x8xbf16>
    "tpu.trace_start"() <{level = 10 : i32, message = "bqd,bkd->bqk"}> : () -> ()
    %cst_50 = arith.constant dense<0.000000e+00> : vector<1x8x8xf32>
    %55 = tpu.matmul %52, %53, %cst_50 {dimension_numbers = #tpu.dot_dimension_numbers<[2], [2], [1], [1], [0, 0, 0, 1, 1, 1], [0], [0]>} : vector<1x8x8xbf16>, vector<1x8x8xbf16>, vector<1x8x8xf32> -> vector<1x8x8xf32>
    "tpu.trace_stop"() : () -> ()
    %56 = arith.addf %55, %35 : vector<1x8x8xf32>
    %cst_51 = arith.constant dense<0xFF800000> : vector<1x8xf32>
    %57 = vector.multi_reduction <maximumf>, %56, %cst_51 [2] : vector<1x8x8xf32> to vector<1x8xf32>
    %58 = vector.shape_cast %57 : vector<1x8xf32> to vector<1x8x1xf32>
    %59 = vector.broadcast %58 : vector<1x8x1xf32> to vector<1x8x8xf32>
    %60 = arith.subf %56, %59 : vector<1x8x8xf32>
    %61 = math.exp %60 : vector<1x8x8xf32>
    %cst_52 = arith.constant dense<0.000000e+00> : vector<1x8xf32>
    %62 = vector.multi_reduction <add>, %61, %cst_52 [2] : vector<1x8x8xf32> to vector<1x8xf32>
    %63 = vector.shape_cast %62 : vector<1x8xf32> to vector<1x8x1xf32>
    %64 = tpu.reciprocal %63 {approx = true} : vector<1x8x1xf32> -> vector<1x8x1xf32>
    %65 = vector.broadcast %64 : vector<1x8x1xf32> to vector<1x8x8xf32>
    %66 = arith.mulf %61, %65 : vector<1x8x8xf32>
    %67 = arith.truncf %66 : vector<1x8x8xf32> to vector<1x8x8xbf16>
    "tpu.trace_start"() <{level = 10 : i32, message = "bqk,bkd->bqd"}> : () -> ()
    %cst_53 = arith.constant dense<0.000000e+00> : vector<1x8x8xf32>
    %68 = tpu.matmul %67, %54, %cst_53 {dimension_numbers = #tpu.dot_dimension_numbers<[2], [1], [1], [2], [0, 0, 0, 1, 1, 2], [0], [0]>} : vector<1x8x8xbf16>, vector<1x8x8xbf16>, vector<1x8x8xf32> -> vector<1x8x8xf32>
    "tpu.trace_stop"() : () -> ()
    %69 = vector.extract_strided_slice %47 {offsets = [0, 0, 8], sizes = [1, 8, 8], strides = [1, 1, 1]} : vector<1x8x32xbf16> to vector<1x8x8xbf16>
    %70 = vector.extract_strided_slice %49 {offsets = [0, 0, 8], sizes = [1, 8, 8], strides = [1, 1, 1]} : vector<1x8x32xbf16> to vector<1x8x8xbf16>
    %71 = vector.extract_strided_slice %51 {offsets = [0, 0, 8], sizes = [1, 8, 8], strides = [1, 1, 1]} : vector<1x8x32xbf16> to vector<1x8x8xbf16>
    "tpu.trace_start"() <{level = 10 : i32, message = "bqd,bkd->bqk"}> : () -> ()
    %cst_54 = arith.constant dense<0.000000e+00> : vector<1x8x8xf32>
    %72 = tpu.matmul %69, %70, %cst_54 {dimension_numbers = #tpu.dot_dimension_numbers<[2], [2], [1], [1], [0, 0, 0, 1, 1, 1], [0], [0]>} : vector<1x8x8xbf16>, vector<1x8x8xbf16>, vector<1x8x8xf32> -> vector<1x8x8xf32>
    "tpu.trace_stop"() : () -> ()
    %73 = arith.addf %72, %35 : vector<1x8x8xf32>
    %cst_55 = arith.constant dense<0xFF800000> : vector<1x8xf32>
    %74 = vector.multi_reduction <maximumf>, %73, %cst_55 [2] : vector<1x8x8xf32> to vector<1x8xf32>
    %75 = vector.shape_cast %74 : vector<1x8xf32> to vector<1x8x1xf32>
    %76 = vector.broadcast %75 : vector<1x8x1xf32> to vector<1x8x8xf32>
    %77 = arith.subf %73, %76 : vector<1x8x8xf32>
    %78 = math.exp %77 : vector<1x8x8xf32>
    %cst_56 = arith.constant dense<0.000000e+00> : vector<1x8xf32>
    %79 = vector.multi_reduction <add>, %78, %cst_56 [2] : vector<1x8x8xf32> to vector<1x8xf32>
    %80 = vector.shape_cast %79 : vector<1x8xf32> to vector<1x8x1xf32>
    %81 = tpu.reciprocal %80 {approx = true} : vector<1x8x1xf32> -> vector<1x8x1xf32>
    %82 = vector.broadcast %81 : vector<1x8x1xf32> to vector<1x8x8xf32>
    %83 = arith.mulf %78, %82 : vector<1x8x8xf32>
    %84 = arith.truncf %83 : vector<1x8x8xf32> to vector<1x8x8xbf16>
    "tpu.trace_start"() <{level = 10 : i32, message = "bqk,bkd->bqd"}> : () -> ()
    %cst_57 = arith.constant dense<0.000000e+00> : vector<1x8x8xf32>
    %85 = tpu.matmul %84, %71, %cst_57 {dimension_numbers = #tpu.dot_dimension_numbers<[2], [1], [1], [2], [0, 0, 0, 1, 1, 2], [0], [0]>} : vector<1x8x8xbf16>, vector<1x8x8xbf16>, vector<1x8x8xf32> -> vector<1x8x8xf32>
    "tpu.trace_stop"() : () -> ()
    %86 = vector.extract_strided_slice %47 {offsets = [0, 0, 16], sizes = [1, 8, 8], strides = [1, 1, 1]} : vector<1x8x32xbf16> to vector<1x8x8xbf16>
    %87 = vector.extract_strided_slice %49 {offsets = [0, 0, 16], sizes = [1, 8, 8], strides = [1, 1, 1]} : vector<1x8x32xbf16> to vector<1x8x8xbf16>
    %88 = vector.extract_strided_slice %51 {offsets = [0, 0, 16], sizes = [1, 8, 8], strides = [1, 1, 1]} : vector<1x8x32xbf16> to vector<1x8x8xbf16>
    "tpu.trace_start"() <{level = 10 : i32, message = "bqd,bkd->bqk"}> : () -> ()
    %cst_58 = arith.constant dense<0.000000e+00> : vector<1x8x8xf32>
    %89 = tpu.matmul %86, %87, %cst_58 {dimension_numbers = #tpu.dot_dimension_numbers<[2], [2], [1], [1], [0, 0, 0, 1, 1, 1], [0], [0]>} : vector<1x8x8xbf16>, vector<1x8x8xbf16>, vector<1x8x8xf32> -> vector<1x8x8xf32>
    "tpu.trace_stop"() : () -> ()
    %90 = arith.addf %89, %35 : vector<1x8x8xf32>
    %cst_59 = arith.constant dense<0xFF800000> : vector<1x8xf32>
    %91 = vector.multi_reduction <maximumf>, %90, %cst_59 [2] : vector<1x8x8xf32> to vector<1x8xf32>
    %92 = vector.shape_cast %91 : vector<1x8xf32> to vector<1x8x1xf32>
    %93 = vector.broadcast %92 : vector<1x8x1xf32> to vector<1x8x8xf32>
    %94 = arith.subf %90, %93 : vector<1x8x8xf32>
    %95 = math.exp %94 : vector<1x8x8xf32>
    %cst_60 = arith.constant dense<0.000000e+00> : vector<1x8xf32>
    %96 = vector.multi_reduction <add>, %95, %cst_60 [2] : vector<1x8x8xf32> to vector<1x8xf32>
    %97 = vector.shape_cast %96 : vector<1x8xf32> to vector<1x8x1xf32>
    %98 = tpu.reciprocal %97 {approx = true} : vector<1x8x1xf32> -> vector<1x8x1xf32>
    %99 = vector.broadcast %98 : vector<1x8x1xf32> to vector<1x8x8xf32>
    %100 = arith.mulf %95, %99 : vector<1x8x8xf32>
    %101 = arith.truncf %100 : vector<1x8x8xf32> to vector<1x8x8xbf16>
    "tpu.trace_start"() <{level = 10 : i32, message = "bqk,bkd->bqd"}> : () -> ()
    %cst_61 = arith.constant dense<0.000000e+00> : vector<1x8x8xf32>
    %102 = tpu.matmul %101, %88, %cst_61 {dimension_numbers = #tpu.dot_dimension_numbers<[2], [1], [1], [2], [0, 0, 0, 1, 1, 2], [0], [0]>} : vector<1x8x8xbf16>, vector<1x8x8xbf16>, vector<1x8x8xf32> -> vector<1x8x8xf32>
    "tpu.trace_stop"() : () -> ()
    %103 = vector.extract_strided_slice %47 {offsets = [0, 0, 24], sizes = [1, 8, 8], strides = [1, 1, 1]} : vector<1x8x32xbf16> to vector<1x8x8xbf16>
    %104 = vector.extract_strided_slice %49 {offsets = [0, 0, 24], sizes = [1, 8, 8], strides = [1, 1, 1]} : vector<1x8x32xbf16> to vector<1x8x8xbf16>
    %105 = vector.extract_strided_slice %51 {offsets = [0, 0, 24], sizes = [1, 8, 8], strides = [1, 1, 1]} : vector<1x8x32xbf16> to vector<1x8x8xbf16>
    "tpu.trace_start"() <{level = 10 : i32, message = "bqd,bkd->bqk"}> : () -> ()
    %cst_62 = arith.constant dense<0.000000e+00> : vector<1x8x8xf32>
    %106 = tpu.matmul %103, %104, %cst_62 {dimension_numbers = #tpu.dot_dimension_numbers<[2], [2], [1], [1], [0, 0, 0, 1, 1, 1], [0], [0]>} : vector<1x8x8xbf16>, vector<1x8x8xbf16>, vector<1x8x8xf32> -> vector<1x8x8xf32>
    "tpu.trace_stop"() : () -> ()
    %107 = arith.addf %106, %35 : vector<1x8x8xf32>
    %cst_63 = arith.constant dense<0xFF800000> : vector<1x8xf32>
    %108 = vector.multi_reduction <maximumf>, %107, %cst_63 [2] : vector<1x8x8xf32> to vector<1x8xf32>
    %109 = vector.shape_cast %108 : vector<1x8xf32> to vector<1x8x1xf32>
    %110 = vector.broadcast %109 : vector<1x8x1xf32> to vector<1x8x8xf32>
    %111 = arith.subf %107, %110 : vector<1x8x8xf32>
    %112 = math.exp %111 : vector<1x8x8xf32>
    %cst_64 = arith.constant dense<0.000000e+00> : vector<1x8xf32>
    %113 = vector.multi_reduction <add>, %112, %cst_64 [2] : vector<1x8x8xf32> to vector<1x8xf32>
    %114 = vector.shape_cast %113 : vector<1x8xf32> to vector<1x8x1xf32>
    %115 = tpu.reciprocal %114 {approx = true} : vector<1x8x1xf32> -> vector<1x8x1xf32>
    %116 = vector.broadcast %115 : vector<1x8x1xf32> to vector<1x8x8xf32>
    %117 = arith.mulf %112, %116 : vector<1x8x8xf32>
    %118 = arith.truncf %117 : vector<1x8x8xf32> to vector<1x8x8xbf16>
    "tpu.trace_start"() <{level = 10 : i32, message = "bqk,bkd->bqd"}> : () -> ()
    %cst_65 = arith.constant dense<0.000000e+00> : vector<1x8x8xf32>
    %119 = tpu.matmul %118, %105, %cst_65 {dimension_numbers = #tpu.dot_dimension_numbers<[2], [1], [1], [2], [0, 0, 0, 1, 1, 2], [0], [0]>} : vector<1x8x8xbf16>, vector<1x8x8xbf16>, vector<1x8x8xf32> -> vector<1x8x8xf32>
    "tpu.trace_stop"() : () -> ()
    %120 = tpu.concatenate %68, %85, %102, %119 in 2 : vector<1x8x8xf32>, vector<1x8x8xf32>, vector<1x8x8xf32>, vector<1x8x8xf32> -> vector<1x8x32xf32>
    %121 = vector.shape_cast %120 : vector<1x8x32xf32> to vector<8x32xf32>
    %122 = arith.truncf %121 : vector<8x32xf32> to vector<8x32xbf16>
    %cst_66 = arith.constant dense<0.000000e+00> : vector<8x32xf32>
    %123 = tpu.matmul %122, %18, %cst_66 {dimension_numbers = #tpu.dot_dimension_numbers<[1], [0], [0], [1], [0, 0, 1, 1], [], []>} : vector<8x32xbf16>, vector<32x32xbf16>, vector<8x32xf32> -> vector<8x32xf32>
    %124 = vector.broadcast %20 : vector<1x32xf32> to vector<8x32xf32>
    %125 = arith.addf %123, %124 : vector<8x32xf32>
    %126 = arith.addf %4, %125 : vector<8x32xf32>
    %cst_67 = arith.constant dense<0.000000e+00> : vector<8xf32>
    %127 = vector.multi_reduction <add>, %126, %cst_67 [1] : vector<8x32xf32> to vector<8xf32>
    %128 = vector.shape_cast %127 : vector<8xf32> to vector<8x1xf32>
    %cst_68 = arith.constant 3.200000e+01 : f32
    %129 = vector.broadcast %cst_68 : f32 to vector<8x1xf32>
    %130 = arith.divf %128, %129 : vector<8x1xf32>
    %131 = vector.broadcast %130 : vector<8x1xf32> to vector<8x32xf32>
    %132 = arith.subf %126, %131 : vector<8x32xf32>
    %133 = arith.mulf %132, %132 : vector<8x32xf32>
    %cst_69 = arith.constant dense<0.000000e+00> : vector<8xf32>
    %134 = vector.multi_reduction <add>, %133, %cst_69 [1] : vector<8x32xf32> to vector<8xf32>
    %135 = vector.shape_cast %134 : vector<8xf32> to vector<8x1xf32>
    %cst_70 = arith.constant 3.200000e+01 : f32
    %136 = vector.broadcast %cst_70 : f32 to vector<8x1xf32>
    %137 = arith.divf %135, %136 : vector<8x1xf32>
    %138 = vector.broadcast %130 : vector<8x1xf32> to vector<8x32xf32>
    %139 = arith.subf %126, %138 : vector<8x32xf32>
    %cst_71 = arith.constant 9.99999974E-6 : f32
    %140 = vector.broadcast %cst_71 : f32 to vector<8x1xf32>
    %141 = arith.addf %137, %140 : vector<8x1xf32>
    %142 = math.rsqrt %141 : vector<8x1xf32>
    %143 = vector.broadcast %142 : vector<8x1xf32> to vector<8x32xf32>
    %144 = arith.mulf %139, %143 : vector<8x32xf32>
    %145 = vector.broadcast %22 : vector<1x32xf32> to vector<8x32xf32>
    %146 = arith.mulf %144, %145 : vector<8x32xf32>
    %147 = vector.broadcast %24 : vector<1x32xf32> to vector<8x32xf32>
    %148 = arith.addf %146, %147 : vector<8x32xf32>
    %149 = arith.truncf %148 : vector<8x32xf32> to vector<8x32xbf16>
    %cst_72 = arith.constant dense<0.000000e+00> : vector<8x128xf32>
    %150 = tpu.matmul %149, %26, %cst_72 {dimension_numbers = #tpu.dot_dimension_numbers<[1], [0], [0], [1], [0, 0, 1, 1], [], []>} : vector<8x32xbf16>, vector<32x128xbf16>, vector<8x128xf32> -> vector<8x128xf32>
    %151 = vector.broadcast %28 : vector<1x128xf32> to vector<8x128xf32>
    %152 = arith.addf %150, %151 : vector<8x128xf32>
    %cst_73 = arith.constant 0.000000e+00 : f32
    %153 = vector.broadcast %cst_73 : f32 to vector<8x128xf32>
    %154 = arith.maximumf %152, %153 : vector<8x128xf32>
    %155 = arith.truncf %154 : vector<8x128xf32> to vector<8x128xbf16>
    %cst_74 = arith.constant dense<0.000000e+00> : vector<8x32xf32>
    %156 = tpu.matmul %155, %30, %cst_74 {dimension_numbers = #tpu.dot_dimension_numbers<[1], [0], [0], [1], [0, 0, 1, 1], [], []>} : vector<8x128xbf16>, vector<128x32xbf16>, vector<8x32xf32> -> vector<8x32xf32>
    %157 = vector.broadcast %32 : vector<1x32xf32> to vector<8x32xf32>
    %158 = arith.addf %156, %157 : vector<8x32xf32>
    %159 = arith.addf %148, %158 : vector<8x32xf32>
    %cst_75 = arith.constant dense<0.000000e+00> : vector<8xf32>
    %160 = vector.multi_reduction <add>, %159, %cst_75 [1] : vector<8x32xf32> to vector<8xf32>
    %161 = vector.shape_cast %160 : vector<8xf32> to vector<8x1xf32>
    %cst_76 = arith.constant 3.200000e+01 : f32
    %162 = vector.broadcast %cst_76 : f32 to vector<8x1xf32>
    %163 = arith.divf %161, %162 : vector<8x1xf32>
    %164 = vector.broadcast %163 : vector<8x1xf32> to vector<8x32xf32>
    %165 = arith.subf %159, %164 : vector<8x32xf32>
    %166 = arith.mulf %165, %165 : vector<8x32xf32>
    %cst_77 = arith.constant dense<0.000000e+00> : vector<8xf32>
    %167 = vector.multi_reduction <add>, %166, %cst_77 [1] : vector<8x32xf32> to vector<8xf32>
    %168 = vector.shape_cast %167 : vector<8xf32> to vector<8x1xf32>
    %cst_78 = arith.constant 3.200000e+01 : f32
    %169 = vector.broadcast %cst_78 : f32 to vector<8x1xf32>
    %170 = arith.divf %168, %169 : vector<8x1xf32>
    %171 = vector.broadcast %163 : vector<8x1xf32> to vector<8x32xf32>
    %172 = arith.subf %159, %171 : vector<8x32xf32>
    %cst_79 = arith.constant 9.99999974E-6 : f32
    %173 = vector.broadcast %cst_79 : f32 to vector<8x1xf32>
    %174 = arith.addf %170, %173 : vector<8x1xf32>
    %175 = math.rsqrt %174 : vector<8x1xf32>
    %176 = vector.broadcast %175 : vector<8x1xf32> to vector<8x32xf32>
    %177 = arith.mulf %172, %176 : vector<8x32xf32>
    %178 = vector.broadcast %22 : vector<1x32xf32> to vector<8x32xf32>
    %179 = arith.mulf %177, %178 : vector<8x32xf32>
    %180 = vector.broadcast %24 : vector<1x32xf32> to vector<8x32xf32>
    %181 = arith.addf %179, %180 : vector<8x32xf32>
    %182 = vector.shape_cast %181 : vector<8x32xf32> to vector<1x8x32xf32>
    %c0_80 = arith.constant 0 : index
    %c0_81 = arith.constant 0 : index
    %c0_82 = arith.constant 0 : index
    %183 = vector.load %arg19[%c0_80, %c0_81, %c0_82] : memref<1x8x32xf32, #tpu.memory_space<vmem>>, vector<1x8x32xf32>
    tpu.vector_store %arg19[%c0_80, %c0_81, %c0_82], %182 {strides = array<i32>} : memref<1x8x32xf32, #tpu.memory_space<vmem>>, vector<1x8x32xf32>,
    %c1_i32 = arith.constant 1 : i32
    %184 = arith.cmpi eq, %arg1, %c1_i32 : i32
    %185 = arith.extui %184 : i1 to i32
    %c0_i32_83 = arith.constant 0 : i32
    %186 = arith.cmpi ne, %185, %c0_i32_83 : i32
    scf.if %186 {
      %c0_84 = arith.constant 0 : index
      %c0_85 = arith.constant 0 : index
      %c0_86 = arith.constant 0 : index
      %187 = vector.load %arg19[%c0_84, %c0_85, %c0_86] : memref<1x8x32xf32, #tpu.memory_space<vmem>>, vector<1x8x32xf32>
      %c0_87 = arith.constant 0 : index
      %c0_88 = arith.constant 0 : index
      %c0_89 = arith.constant 0 : index
      %188 = vector.load %arg18[%c0_87, %c0_88, %c0_89] : memref<1x8x32xf32, #tpu.memory_space<vmem>>, vector<1x8x32xf32>
      tpu.vector_store %arg18[%c0_87, %c0_88, %c0_89], %187 {strides = array<i32>} : memref<1x8x32xf32, #tpu.memory_space<vmem>>, vector<1x8x32xf32>,
    } else {
    }
    return
  }
  func.func @transform_0(%arg0: i32, %arg1: i32) -> (i32, i32, i32) {
    %c0_i32 = arith.constant 0 : i32
    %c0_i32_0 = arith.constant 0 : i32
    %c0_i32_1 = arith.constant 0 : i32
    return %arg0, %c0_i32, %c0_i32_0 : i32, i32, i32
  }
  func.func @transform_1(%arg0: i32, %arg1: i32) -> (i32, i32, i32) {
    %c0_i32 = arith.constant 0 : i32
    %c0_i32_0 = arith.constant 0 : i32
    %c0_i32_1 = arith.constant 0 : i32
    return %arg0, %c0_i32, %c0_i32_0 : i32, i32, i32
  }
  func.func @transform_2(%arg0: i32, %arg1: i32) -> (i32, i32, i32) {
    %c0_i32 = arith.constant 0 : i32
    %c0_i32_0 = arith.constant 0 : i32
    %c0_i32_1 = arith.constant 0 : i32
    return %arg1, %c0_i32, %c0_i32_0 : i32, i32, i32
  }
  func.func @transform_3(%arg0: i32, %arg1: i32) -> (i32, i32, i32) {
    %c0_i32 = arith.constant 0 : i32
    %c0_i32_0 = arith.constant 0 : i32
    %c0_i32_1 = arith.constant 0 : i32
    return %arg1, %c0_i32, %c0_i32_0 : i32, i32, i32
  }
  func.func @transform_4(%arg0: i32, %arg1: i32) -> (i32, i32, i32) {
    %c0_i32 = arith.constant 0 : i32
    %c0_i32_0 = arith.constant 0 : i32
    %c0_i32_1 = arith.constant 0 : i32
    return %arg1, %c0_i32, %c0_i32_0 : i32, i32, i32
  }
  func.func @transform_5(%arg0: i32, %arg1: i32) -> (i32, i32, i32) {
    %c0_i32 = arith.constant 0 : i32
    %c0_i32_0 = arith.constant 0 : i32
    %c0_i32_1 = arith.constant 0 : i32
    return %arg1, %c0_i32, %c0_i32_0 : i32, i32, i32
  }
  func.func @transform_6(%arg0: i32, %arg1: i32) -> (i32, i32, i32) {
    %c0_i32 = arith.constant 0 : i32
    %c0_i32_0 = arith.constant 0 : i32
    %c0_i32_1 = arith.constant 0 : i32
    return %arg1, %c0_i32, %c0_i32_0 : i32, i32, i32
  }
  func.func @transform_7(%arg0: i32, %arg1: i32) -> (i32, i32, i32) {
    %c0_i32 = arith.constant 0 : i32
    %c0_i32_0 = arith.constant 0 : i32
    %c0_i32_1 = arith.constant 0 : i32
    return %arg1, %c0_i32, %c0_i32_0 : i32, i32, i32
  }
  func.func @transform_8(%arg0: i32, %arg1: i32) -> (i32, i32, i32) {
    %c0_i32 = arith.constant 0 : i32
    %c0_i32_0 = arith.constant 0 : i32
    %c0_i32_1 = arith.constant 0 : i32
    return %arg1, %c0_i32, %c0_i32_0 : i32, i32, i32
  }
  func.func @transform_9(%arg0: i32, %arg1: i32) -> (i32, i32, i32) {
    %c0_i32 = arith.constant 0 : i32
    %c0_i32_0 = arith.constant 0 : i32
    %c0_i32_1 = arith.constant 0 : i32
    return %arg1, %c0_i32, %c0_i32_0 : i32, i32, i32
  }
  func.func @transform_10(%arg0: i32, %arg1: i32) -> (i32, i32, i32) {
    %c0_i32 = arith.constant 0 : i32
    %c0_i32_0 = arith.constant 0 : i32
    %c0_i32_1 = arith.constant 0 : i32
    return %arg1, %c0_i32, %c0_i32_0 : i32, i32, i32
  }
  func.func @transform_11(%arg0: i32, %arg1: i32) -> (i32, i32, i32) {
    %c0_i32 = arith.constant 0 : i32
    %c0_i32_0 = arith.constant 0 : i32
    %c0_i32_1 = arith.constant 0 : i32
    return %arg1, %c0_i32, %c0_i32_0 : i32, i32, i32
  }
  func.func @transform_12(%arg0: i32, %arg1: i32) -> (i32, i32, i32) {
    %c0_i32 = arith.constant 0 : i32
    %c0_i32_0 = arith.constant 0 : i32
    %c0_i32_1 = arith.constant 0 : i32
    return %arg1, %c0_i32, %c0_i32_0 : i32, i32, i32
  }
  func.func @transform_13(%arg0: i32, %arg1: i32) -> (i32, i32, i32) {
    %c0_i32 = arith.constant 0 : i32
    %c0_i32_0 = arith.constant 0 : i32
    %c0_i32_1 = arith.constant 0 : i32
    return %arg1, %c0_i32, %c0_i32_0 : i32, i32, i32
  }
  func.func @transform_14(%arg0: i32, %arg1: i32) -> (i32, i32, i32) {
    %c0_i32 = arith.constant 0 : i32
    %c0_i32_0 = arith.constant 0 : i32
    %c0_i32_1 = arith.constant 0 : i32
    return %arg1, %c0_i32, %c0_i32_0 : i32, i32, i32
  }
  func.func @transform_15(%arg0: i32, %arg1: i32) -> (i32, i32, i32) {
    %c0_i32 = arith.constant 0 : i32
    %c0_i32_0 = arith.constant 0 : i32
    %c0_i32_1 = arith.constant 0 : i32
    return %arg1, %c0_i32, %c0_i32_0 : i32, i32, i32
  }
  func.func @transform_16(%arg0: i32, %arg1: i32) -> (i32, i32, i32) {
    %c0_i32 = arith.constant 0 : i32
    %c0_i32_0 = arith.constant 0 : i32
    %c0_i32_1 = arith.constant 0 : i32
    return %arg0, %c0_i32, %c0_i32_0 : i32, i32, i32
  }
}

</mosaic_0001>

<llo_original>
// kernel: tpu_custom_call.1
$region0: #{tpu_custom_call.1}
  #allocation0 [shape = 'u32[]', space=smem, size = 0x4, offset = 0x4, fixed_abs, tag = 'smem constant byte address 0x4 - core index']
  #allocation1 [shape = 'u32[144,128]{1,0:T(1,128)}', space=vmem, size = 0x12000, scoped, tag = 'internal scratch']
  #allocation2 [shape = 'f32[1,8,32]{2,1,0:T(8,128)}', space=vmem, size = 0x1000, scoped, tag = 'scratch operand']
  %s0 = inlined_call_operand.hbm [shape: f32[2,8,32], index: 0, kind: input, shape index: {}]
  %s1 = inlined_call_operand.hbm [shape: f32[2,1,8], index: 1, kind: input, shape index: {}]
  %s2 = inlined_call_operand.hbm [shape: bf16[2,32,32], index: 2, kind: input, shape index: {}]
  %s3 = inlined_call_operand.hbm [shape: f32[2,1,32], index: 3, kind: input, shape index: {}]
  %s4 = inlined_call_operand.hbm [shape: bf16[2,32,32], index: 4, kind: input, shape index: {}]
  %s5 = inlined_call_operand.hbm [shape: f32[2,1,32], index: 5, kind: input, shape index: {}]
  %s6 = inlined_call_operand.hbm [shape: bf16[2,32,32], index: 6, kind: input, shape index: {}]
  %s7 = inlined_call_operand.hbm [shape: f32[2,1,32], index: 7, kind: input, shape index: {}]
  %s8 = inlined_call_operand.hbm [shape: bf16[2,32,32], index: 8, kind: input, shape index: {}]
  %s9 = inlined_call_operand.hbm [shape: f32[2,1,32], index: 9, kind: input, shape index: {}]
  %s10 = inlined_call_operand.hbm [shape: f32[2,1,32], index: 10, kind: input, shape index: {}]
  %s11 = inlined_call_operand.hbm [shape: f32[2,1,32], index: 11, kind: input, shape index: {}]
  %s12 = inlined_call_operand.hbm [shape: bf16[2,32,128], index: 12, kind: input, shape index: {}]
  %s13 = inlined_call_operand.hbm [shape: f32[2,1,128], index: 13, kind: input, shape index: {}]
  %s14 = inlined_call_operand.hbm [shape: bf16[2,128,32], index: 14, kind: input, shape index: {}]
  %s15 = inlined_call_operand.hbm [shape: f32[2,1,32], index: 15, kind: input, shape index: {}]
  %s16 = inlined_call_operand.hbm [shape: f32[2,8,32], index: 16, kind: output, shape index: {}]
  %s17 = sld [smem:[#allocation0]]
  $region169: #{tpu_custom_call.1} parent=0
    _
  %s19 = ssub.s32 1, %s17
  %s20 = scalar_select 0, %s19, %s17
  $region1: #{tpu_custom_call.1} parent=0
    #allocation3 [shape = 'u8[8192]{0}', space=vmem, size = 0x2000, scoped, tag = 'input window, operand 0']
    #allocation4 [shape = 's32[2]{0}', space=sflag, size = 0x8, scoped, tag = 'scoped memory for tpu_custom_call.1']
    #allocation5 [shape = 's32[2]{0}', space=sflag, size = 0x8, scoped, tag = 'scoped memory for tpu_custom_call.1']
    #allocation6 [shape = 'u8[1024]{0}', space=vmem, size = 0x400, scoped, tag = 'input window, operand 1']
    #allocation7 [shape = 's32[2]{0}', space=sflag, size = 0x8, scoped, tag = 'scoped memory for tpu_custom_call.1']
    #allocation8 [shape = 'u8[16384]{0}', space=vmem, size = 0x4000, scoped, tag = 'input window, operand 2']
    #allocation9 [shape = 'u8[1024]{0}', space=vmem, size = 0x400, scoped, tag = 'input window, operand 3']
    #allocation10 [shape = 's32[2]{0}', space=sflag, size = 0x8, scoped, tag = 'scoped memory for tpu_custom_call.1']
    #allocation11 [shape = 'u8[16384]{0}', space=vmem, size = 0x4000, scoped, tag = 'input window, operand 4']
    #allocation12 [shape = 'u8[1024]{0}', space=vmem, size = 0x400, scoped, tag = 'input window, operand 5']
    #allocation13 [shape = 's32[2]{0}', space=sflag, size = 0x8, scoped, tag = 'scoped memory for tpu_custom_call.1']
    #allocation14 [shape = 'u8[16384]{0}', space=vmem, size = 0x4000, scoped, tag = 'input window, operand 6']
    #allocation15 [shape = 'u8[1024]{0}', space=vmem, size = 0x400, scoped, tag = 'input window, operand 7']
    #allocation16 [shape = 's32[2]{0}', space=sflag, size = 0x8, scoped, tag = 'scoped memory for tpu_custom_call.1']
    #allocation17 [shape = 'u8[16384]{0}', space=vmem, size = 0x4000, scoped, tag = 'input window, operand 8']
    #allocation18 [shape = 'u8[1024]{0}', space=vmem, size = 0x400, scoped, tag = 'input window, operand 9']
    #allocation19 [shape = 's32[2]{0}', space=sflag, size = 0x8, scoped, tag = 'scoped memory for tpu_custom_call.1']
    #allocation20 [shape = 'u8[1024]{0}', space=vmem, size = 0x400, scoped, tag = 'input window, operand 10']
    #allocation21 [shape = 'u8[1024]{0}', space=vmem, size = 0x400, scoped, tag = 'input window, operand 11']
    #allocation22 [shape = 's32[2]{0}', space=sflag, size = 0x8, scoped, tag = 'scoped memory for tpu_custom_call.1']
    #allocation23 [shape = 'u8[16384]{0}', space=vmem, size = 0x4000, scoped, tag = 'input window, operand 12']
    #allocation24 [shape = 'u8[1024]{0}', space=vmem, size = 0x400, scoped, tag = 'input window, operand 13']
    #allocation25 [shape = 's32[2]{0}', space=sflag, size = 0x8, scoped, tag = 'scoped memory for tpu_custom_call.1']
    #allocation26 [shape = 'u8[65536]{0}', space=vmem, size = 0x10000, scoped, tag = 'input window, operand 14']
    #allocation27 [shape = 'u8[1024]{0}', space=vmem, size = 0x400, scoped, tag = 'input window, operand 15']
    #allocation28 [shape = 's32[2]{0}', space=sflag, size = 0x8, scoped, tag = 'scoped memory for tpu_custom_call.1']
    #allocation29 [shape = 'u8[8192]{0}', space=vmem, size = 0x2000, scoped, tag = 'output window, operand 0']
    %21 = vsyncpa [#allocation4], 0
    %s22 = scalar_lea.sflag [#allocation4], 1
    %23 = vsyncpa %s22, 0
    %24 = vsyncpa [#allocation7], 0
    %s25 = scalar_lea.sflag [#allocation7], 1
    %26 = vsyncpa %s25, 0
    %27 = vsyncpa [#allocation10], 0
    %s28 = scalar_lea.sflag [#allocation10], 1
    %29 = vsyncpa %s28, 0
    %30 = vsyncpa [#allocation13], 0
    %s31 = scalar_lea.sflag [#allocation13], 1
    %32 = vsyncpa %s31, 0
    %33 = vsyncpa [#allocation16], 0
    %s34 = scalar_lea.sflag [#allocation16], 1
    %35 = vsyncpa %s34, 0
    %36 = vsyncpa [#allocation19], 0
    %s37 = scalar_lea.sflag [#allocation19], 1
    %38 = vsyncpa %s37, 0
    %39 = vsyncpa [#allocation22], 0
    %s40 = scalar_lea.sflag [#allocation22], 1
    %41 = vsyncpa %s40, 0
    %42 = vsyncpa [#allocation25], 0
    %s43 = scalar_lea.sflag [#allocation25], 1
    %44 = vsyncpa %s43, 0
    %45 = vsyncpa [#allocation28], 0
    %s46 = scalar_lea.sflag [#allocation28], 1
    %47 = vsyncpa %s46, 0
    %48 = vsyncpa [#allocation5], 0
    %s49 = scalar_lea.sflag [#allocation5], 1
    %50 = vsyncpa %s49, 0
    loop: start=0, step=1, limit=6
    $region2: #{tpu_custom_call.1} parent=1 // loop_pre_header
      _
    $region3: #{tpu_custom_call.1} parent=1 // loop_header
      %s52 = sphi 0, %s56
      %p53 = scmp.ge.s32.totalorder %s52, 6
      %s59 = sphi 0, %s71
      %s60 = sphi 0, %s67
      %s61 = sphi 0, %s59
      %s62 = sphi 0, %s60
      %s63 = sphi 0, %s61
      %s64 = sphi 0, %s62
      %s74 = sphi 0, %s76
      %s77 = sphi 0, %s74
      %s78 = sphi 0, %s77
      %s94 = sphi 0, %s78
      %s100 = sphi 0, %s102
      %s103 = sphi 0, %s100
      %s104 = sphi 0, %s103
      %s120 = sphi 0, %s104
      %s126 = sphi 0, %s128
      %s129 = sphi 0, %s126
      %s130 = sphi 0, %s129
      %s146 = sphi 0, %s130
      %s152 = sphi 0, %s154
      %s155 = sphi 0, %s152
      %s156 = sphi 0, %s155
      %s172 = sphi 0, %s156
      %s178 = sphi 0, %s180
      %s181 = sphi 0, %s178
      %s182 = sphi 0, %s181
      %s198 = sphi 0, %s182
      %s204 = sphi 0, %s206
      %s207 = sphi 0, %s204
      %s208 = sphi 0, %s207
      %s224 = sphi 0, %s208
      %s230 = sphi 0, %s232
      %s233 = sphi 0, %s230
      %s234 = sphi 0, %s233
      %s250 = sphi 0, %s234
      %s256 = sphi 0, %s258
      %s259 = sphi 0, %s256
      %s260 = sphi 0, %s259
      %s276 = sphi 0, %s260
      %s282 = sphi 0, %s284
      %s285 = sphi 0, %s282
      %s286 = sphi 0, %s285
      %s302 = sphi 0, %s286
      %s308 = sphi 0, %s310
      %s311 = sphi 0, %s308
      %s312 = sphi 0, %s311
      %s328 = sphi 0, %s312
      %s334 = sphi 0, %s336
      %s337 = sphi 0, %s334
      %s338 = sphi 0, %s337
      %s354 = sphi 0, %s338
      %s360 = sphi 0, %s362
      %s363 = sphi 0, %s360
      %s364 = sphi 0, %s363
      %s380 = sphi 0, %s364
      %s386 = sphi 0, %s388
      %s389 = sphi 0, %s386
      %s390 = sphi 0, %s389
      %s406 = sphi 0, %s390
      %s412 = sphi 0, %s414
      %s415 = sphi 0, %s412
      %s416 = sphi 0, %s415
      %s432 = sphi 0, %s416
      %s438 = sphi 0, %s440
      %s441 = sphi 0, %s438
      %s442 = sphi 0, %s441
      %s458 = sphi 0, %s442
      %s464 = sphi 0, %s466
      %s467 = sphi 0, %s464
      %s468 = sphi 0, %s467
      %s484 = sphi 0, %s468
      %s490 = sphi 0, %s492
      %s493 = sphi 0, %s490
      %s494 = sphi 0, %s493
      %s510 = sphi 0, %s494
    $region4: #{tpu_custom_call.1} parent=1 // loop_header_branch
      %55 = sbr.rel (%p53) target = $region8
    $region5: #{tpu_custom_call.1} parent=1 // loop_body
      %s57 = ssub.s32 %s52, 1
      %s58 = ssub.s32 %s52, 2
      %s65 = sadd.s32 1, %s60
      %p66 = scmp.ge.s32.totalorder %s65, 2
      %s67 = scalar_select %p66, 0, %s65
      %s68 = sadd.s32 1, %s59
      %s69 = scalar_select %p66, %s68, %s59
      %p70 = scmp.ge.s32.totalorder %s69, 2
      %s71 = scalar_select %p70, 0, %s69
      %s72 = ssub.s32 %s59, %s71
      %p73 = scmp.eq.s32.totalorder %s72, 0
      %s75 = sadd.s32 %s74, 1
      %s76 = scalar_select %p73, %s74, %s75
      %p79 = pneg %p73
      %p80 = scmp.eq.s32.totalorder %s52, 3
      %p81 = por %p79, %p80
      %p82 = scmp.ne.s32.totalorder %s74, %s77
      %p83 = scmp.eq.s32.totalorder %s52, 0
      %p84 = por %p82, %p83
      %p85 = scmp.ne.s32.totalorder %s74, %s77
      %p86 = scmp.eq.s32.totalorder %s57, 3
      %p87 = por %p85, %p86
      %p88 = scmp.ne.s32.totalorder %s77, %s78
      %p89 = scmp.eq.s32.totalorder %s57, 0
      %p90 = por %p88, %p89
      %p91 = scmp.ne.s32.totalorder %s77, %s78
      %p92 = scmp.eq.s32.totalorder %s58, 3
      %p93 = por %p91, %p92
      %p95 = scmp.ne.s32.totalorder %s78, %s94
      %p96 = scmp.eq.s32.totalorder %s58, 0
      %p97 = por %p95, %p96
      %s98 = ssub.s32 %s59, %s71
      %p99 = scmp.eq.s32.totalorder %s98, 0
      %s101 = sadd.s32 %s100, 1
      %s102 = scalar_select %p99, %s100, %s101
      %p105 = pneg %p99
      %p106 = scmp.eq.s32.totalorder %s52, 3
      %p107 = por %p105, %p106
      %p108 = scmp.ne.s32.totalorder %s100, %s103
      %p109 = scmp.eq.s32.totalorder %s52, 0
      %p110 = por %p108, %p109
      %p111 = scmp.ne.s32.totalorder %s100, %s103
      %p112 = scmp.eq.s32.totalorder %s57, 3
      %p113 = por %p111, %p112
      %p114 = scmp.ne.s32.totalorder %s103, %s104
      %p115 = scmp.eq.s32.totalorder %s57, 0
      %p116 = por %p114, %p115
      %p117 = scmp.ne.s32.totalorder %s103, %s104
      %p118 = scmp.eq.s32.totalorder %s58, 3
      %p119 = por %p117, %p118
      %p121 = scmp.ne.s32.totalorder %s104, %s120
      %p122 = scmp.eq.s32.totalorder %s58, 0
      %p123 = por %p121, %p122
      %s124 = ssub.s32 %s60, %s67
      %p125 = scmp.eq.s32.totalorder %s124, 0
      %s127 = sadd.s32 %s126, 1
      %s128 = scalar_select %p125, %s126, %s127
      %p131 = pneg %p125
      %p132 = scmp.eq.s32.totalorder %s52, 3
      %p133 = por %p131, %p132
      %p134 = scmp.ne.s32.totalorder %s126, %s129
      %p135 = scmp.eq.s32.totalorder %s52, 0
      %p136 = por %p134, %p135
      %p137 = scmp.ne.s32.totalorder %s126, %s129
      %p138 = scmp.eq.s32.totalorder %s57, 3
      %p139 = por %p137, %p138
      %p140 = scmp.ne.s32.totalorder %s129, %s130
      %p141 = scmp.eq.s32.totalorder %s57, 0
      %p142 = por %p140, %p141
      %p143 = scmp.ne.s32.totalorder %s129, %s130
      %p144 = scmp.eq.s32.totalorder %s58, 3
      %p145 = por %p143, %p144
      %p147 = scmp.ne.s32.totalorder %s130, %s146
      %p148 = scmp.eq.s32.totalorder %s58, 0
      %p149 = por %p147, %p148
      %s150 = ssub.s32 %s60, %s67
      %p151 = scmp.eq.s32.totalorder %s150, 0
      %s153 = sadd.s32 %s152, 1
      %s154 = scalar_select %p151, %s152, %s153
      %p157 = pneg %p151
      %p158 = scmp.eq.s32.totalorder %s52, 3
      %p159 = por %p157, %p158
      %p160 = scmp.ne.s32.totalorder %s152, %s155
      %p161 = scmp.eq.s32.totalorder %s52, 0
      %p162 = por %p160, %p161
      %p163 = scmp.ne.s32.totalorder %s152, %s155
      %p164 = scmp.eq.s32.totalorder %s57, 3
      %p165 = por %p163, %p164
      %p166 = scmp.ne.s32.totalorder %s155, %s156
      %p167 = scmp.eq.s32.totalorder %s57, 0
      %p168 = por %p166, %p167
      %p169 = scmp.ne.s32.totalorder %s155, %s156
      %p170 = scmp.eq.s32.totalorder %s58, 3
      %p171 = por %p169, %p170
      %p173 = scmp.ne.s32.totalorder %s156, %s172
      %p174 = scmp.eq.s32.totalorder %s58, 0
      %p175 = por %p173, %p174
      %s176 = ssub.s32 %s60, %s67
      %p177 = scmp.eq.s32.totalorder %s176, 0
      %s179 = sadd.s32 %s178, 1
      %s180 = scalar_select %p177, %s178, %s179
      %p183 = pneg %p177
      %p184 = scmp.eq.s32.totalorder %s52, 3
      %p185 = por %p183, %p184
      %p186 = scmp.ne.s32.totalorder %s178, %s181
      %p187 = scmp.eq.s32.totalorder %s52, 0
      %p188 = por %p186, %p187
      %p189 = scmp.ne.s32.totalorder %s178, %s181
      %p190 = scmp.eq.s32.totalorder %s57, 3
      %p191 = por %p189, %p190
      %p192 = scmp.ne.s32.totalorder %s181, %s182
      %p193 = scmp.eq.s32.totalorder %s57, 0
      %p194 = por %p192, %p193
      %p195 = scmp.ne.s32.totalorder %s181, %s182
      %p196 = scmp.eq.s32.totalorder %s58, 3
      %p197 = por %p195, %p196
      %p199 = scmp.ne.s32.totalorder %s182, %s198
      %p200 = scmp.eq.s32.totalorder %s58, 0
      %p201 = por %p199, %p200
      %s202 = ssub.s32 %s60, %s67
      %p203 = scmp.eq.s32.totalorder %s202, 0
      %s205 = sadd.s32 %s204, 1
      %s206 = scalar_select %p203, %s204, %s205
      %p209 = pneg %p203
      %p210 = scmp.eq.s32.totalorder %s52, 3
      %p211 = por %p209, %p210
      %p212 = scmp.ne.s32.totalorder %s204, %s207
      %p213 = scmp.eq.s32.totalorder %s52, 0
      %p214 = por %p212, %p213
      %p215 = scmp.ne.s32.totalorder %s204, %s207
      %p216 = scmp.eq.s32.totalorder %s57, 3
      %p217 = por %p215, %p216
      %p218 = scmp.ne.s32.totalorder %s207, %s208
      %p219 = scmp.eq.s32.totalorder %s57, 0
      %p220 = por %p218, %p219
      %p221 = scmp.ne.s32.totalorder %s207, %s208
      %p222 = scmp.eq.s32.totalorder %s58, 3
      %p223 = por %p221, %p222
      %p225 = scmp.ne.s32.totalorder %s208, %s224
      %p226 = scmp.eq.s32.totalorder %s58, 0
      %p227 = por %p225, %p226
      %s228 = ssub.s32 %s60, %s67
      %p229 = scmp.eq.s32.totalorder %s228, 0
      %s231 = sadd.s32 %s230, 1
      %s232 = scalar_select %p229, %s230, %s231
      %p235 = pneg %p229
      %p236 = scmp.eq.s32.totalorder %s52, 3
      %p237 = por %p235, %p236
      %p238 = scmp.ne.s32.totalorder %s230, %s233
      %p239 = scmp.eq.s32.totalorder %s52, 0
      %p240 = por %p238, %p239
      %p241 = scmp.ne.s32.totalorder %s230, %s233
      %p242 = scmp.eq.s32.totalorder %s57, 3
      %p243 = por %p241, %p242
      %p244 = scmp.ne.s32.totalorder %s233, %s234
      %p245 = scmp.eq.s32.totalorder %s57, 0
      %p246 = por %p244, %p245
      %p247 = scmp.ne.s32.totalorder %s233, %s234
      %p248 = scmp.eq.s32.totalorder %s58, 3
      %p249 = por %p247, %p248
      %p251 = scmp.ne.s32.totalorder %s234, %s250
      %p252 = scmp.eq.s32.totalorder %s58, 0
      %p253 = por %p251, %p252
      %s254 = ssub.s32 %s60, %s67
      %p255 = scmp.eq.s32.totalorder %s254, 0
      %s257 = sadd.s32 %s256, 1
      %s258 = scalar_select %p255, %s256, %s257
      %p261 = pneg %p255
      %p262 = scmp.eq.s32.totalorder %s52, 3
      %p263 = por %p261, %p262
      %p264 = scmp.ne.s32.totalorder %s256, %s259
      %p265 = scmp.eq.s32.totalorder %s52, 0
      %p266 = por %p264, %p265
      %p267 = scmp.ne.s32.totalorder %s256, %s259
      %p268 = scmp.eq.s32.totalorder %s57, 3
      %p269 = por %p267, %p268
      %p270 = scmp.ne.s32.totalorder %s259, %s260
      %p271 = scmp.eq.s32.totalorder %s57, 0
      %p272 = por %p270, %p271
      %p273 = scmp.ne.s32.totalorder %s259, %s260
      %p274 = scmp.eq.s32.totalorder %s58, 3
      %p275 = por %p273, %p274
      %p277 = scmp.ne.s32.totalorder %s260, %s276
      %p278 = scmp.eq.s32.totalorder %s58, 0
      %p279 = por %p277, %p278
      %s280 = ssub.s32 %s60, %s67
      %p281 = scmp.eq.s32.totalorder %s280, 0
      %s283 = sadd.s32 %s282, 1
      %s284 = scalar_select %p281, %s282, %s283
      %p287 = pneg %p281
      %p288 = scmp.eq.s32.totalorder %s52, 3
      %p289 = por %p287, %p288
      %p290 = scmp.ne.s32.totalorder %s282, %s285
      %p291 = scmp.eq.s32.totalorder %s52, 0
      %p292 = por %p290, %p291
      %p293 = scmp.ne.s32.totalorder %s282, %s285
      %p294 = scmp.eq.s32.totalorder %s57, 3
      %p295 = por %p293, %p294
      %p296 = scmp.ne.s32.totalorder %s285, %s286
      %p297 = scmp.eq.s32.totalorder %s57, 0
      %p298 = por %p296, %p297
      %p299 = scmp.ne.s32.totalorder %s285, %s286
      %p300 = scmp.eq.s32.totalorder %s58, 3
      %p301 = por %p299, %p300
      %p303 = scmp.ne.s32.totalorder %s286, %s302
      %p304 = scmp.eq.s32.totalorder %s58, 0
      %p305 = por %p303, %p304
      %s306 = ssub.s32 %s60, %s67
      %p307 = scmp.eq.s32.totalorder %s306, 0
      %s309 = sadd.s32 %s308, 1
      %s310 = scalar_select %p307, %s308, %s309
      %p313 = pneg %p307
      %p314 = scmp.eq.s32.totalorder %s52, 3
      %p315 = por %p313, %p314
      %p316 = scmp.ne.s32.totalorder %s308, %s311
      %p317 = scmp.eq.s32.totalorder %s52, 0
      %p318 = por %p316, %p317
      %p319 = scmp.ne.s32.totalorder %s308, %s311
      %p320 = scmp.eq.s32.totalorder %s57, 3
      %p321 = por %p319, %p320
      %p322 = scmp.ne.s32.totalorder %s311, %s312
      %p323 = scmp.eq.s32.totalorder %s57, 0
      %p324 = por %p322, %p323
      %p325 = scmp.ne.s32.totalorder %s311, %s312
      %p326 = scmp.eq.s32.totalorder %s58, 3
      %p327 = por %p325, %p326
      %p329 = scmp.ne.s32.totalorder %s312, %s328
      %p330 = scmp.eq.s32.totalorder %s58, 0
      %p331 = por %p329, %p330
      %s332 = ssub.s32 %s60, %s67
      %p333 = scmp.eq.s32.totalorder %s332, 0
      %s335 = sadd.s32 %s334, 1
      %s336 = scalar_select %p333, %s334, %s335
      %p339 = pneg %p333
      %p340 = scmp.eq.s32.totalorder %s52, 3
      %p341 = por %p339, %p340
      %p342 = scmp.ne.s32.totalorder %s334, %s337
      %p343 = scmp.eq.s32.totalorder %s52, 0
      %p344 = por %p342, %p343
      %p345 = scmp.ne.s32.totalorder %s334, %s337
      %p346 = scmp.eq.s32.totalorder %s57, 3
      %p347 = por %p345, %p346
      %p348 = scmp.ne.s32.totalorder %s337, %s338
      %p349 = scmp.eq.s32.totalorder %s57, 0
      %p350 = por %p348, %p349
      %p351 = scmp.ne.s32.totalorder %s337, %s338
      %p352 = scmp.eq.s32.totalorder %s58, 3
      %p353 = por %p351, %p352
      %p355 = scmp.ne.s32.totalorder %s338, %s354
      %p356 = scmp.eq.s32.totalorder %s58, 0
      %p357 = por %p355, %p356
      %s358 = ssub.s32 %s60, %s67
      %p359 = scmp.eq.s32.totalorder %s358, 0
      %s361 = sadd.s32 %s360, 1
      %s362 = scalar_select %p359, %s360, %s361
      %p365 = pneg %p359
      %p366 = scmp.eq.s32.totalorder %s52, 3
      %p367 = por %p365, %p366
      %p368 = scmp.ne.s32.totalorder %s360, %s363
      %p369 = scmp.eq.s32.totalorder %s52, 0
      %p370 = por %p368, %p369
      %p371 = scmp.ne.s32.totalorder %s360, %s363
      %p372 = scmp.eq.s32.totalorder %s57, 3
      %p373 = por %p371, %p372
      %p374 = scmp.ne.s32.totalorder %s363, %s364
      %p375 = scmp.eq.s32.totalorder %s57, 0
      %p376 = por %p374, %p375
      %p377 = scmp.ne.s32.totalorder %s363, %s364
      %p378 = scmp.eq.s32.totalorder %s58, 3
      %p379 = por %p377, %p378
      %p381 = scmp.ne.s32.totalorder %s364, %s380
      %p382 = scmp.eq.s32.totalorder %s58, 0
      %p383 = por %p381, %p382
      %s384 = ssub.s32 %s60, %s67
      %p385 = scmp.eq.s32.totalorder %s384, 0
      %s387 = sadd.s32 %s386, 1
      %s388 = scalar_select %p385, %s386, %s387
      %p391 = pneg %p385
      %p392 = scmp.eq.s32.totalorder %s52, 3
      %p393 = por %p391, %p392
      %p394 = scmp.ne.s32.totalorder %s386, %s389
      %p395 = scmp.eq.s32.totalorder %s52, 0
      %p396 = por %p394, %p395
      %p397 = scmp.ne.s32.totalorder %s386, %s389
      %p398 = scmp.eq.s32.totalorder %s57, 3
      %p399 = por %p397, %p398
      %p400 = scmp.ne.s32.totalorder %s389, %s390
      %p401 = scmp.eq.s32.totalorder %s57, 0
      %p402 = por %p400, %p401
      %p403 = scmp.ne.s32.totalorder %s389, %s390
      %p404 = scmp.eq.s32.totalorder %s58, 3
      %p405 = por %p403, %p404
      %p407 = scmp.ne.s32.totalorder %s390, %s406
      %p408 = scmp.eq.s32.totalorder %s58, 0
      %p409 = por %p407, %p408
      %s410 = ssub.s32 %s60, %s67
      %p411 = scmp.eq.s32.totalorder %s410, 0
      %s413 = sadd.s32 %s412, 1
      %s414 = scalar_select %p411, %s412, %s413
      %p417 = pneg %p411
      %p418 = scmp.eq.s32.totalorder %s52, 3
      %p419 = por %p417, %p418
      %p420 = scmp.ne.s32.totalorder %s412, %s415
      %p421 = scmp.eq.s32.totalorder %s52, 0
      %p422 = por %p420, %p421
      %p423 = scmp.ne.s32.totalorder %s412, %s415
      %p424 = scmp.eq.s32.totalorder %s57, 3
      %p425 = por %p423, %p424
      %p426 = scmp.ne.s32.totalorder %s415, %s416
      %p427 = scmp.eq.s32.totalorder %s57, 0
      %p428 = por %p426, %p427
      %p429 = scmp.ne.s32.totalorder %s415, %s416
      %p430 = scmp.eq.s32.totalorder %s58, 3
      %p431 = por %p429, %p430
      %p433 = scmp.ne.s32.totalorder %s416, %s432
      %p434 = scmp.eq.s32.totalorder %s58, 0
      %p435 = por %p433, %p434
      %s436 = ssub.s32 %s60, %s67
      %p437 = scmp.eq.s32.totalorder %s436, 0
      %s439 = sadd.s32 %s438, 1
      %s440 = scalar_select %p437, %s438, %s439
      %p443 = pneg %p437
      %p444 = scmp.eq.s32.totalorder %s52, 3
      %p445 = por %p443, %p444
      %p446 = scmp.ne.s32.totalorder %s438, %s441
      %p447 = scmp.eq.s32.totalorder %s52, 0
      %p448 = por %p446, %p447
      %p449 = scmp.ne.s32.totalorder %s438, %s441
      %p450 = scmp.eq.s32.totalorder %s57, 3
      %p451 = por %p449, %p450
      %p452 = scmp.ne.s32.totalorder %s441, %s442
      %p453 = scmp.eq.s32.totalorder %s57, 0
      %p454 = por %p452, %p453
      %p455 = scmp.ne.s32.totalorder %s441, %s442
      %p456 = scmp.eq.s32.totalorder %s58, 3
      %p457 = por %p455, %p456
      %p459 = scmp.ne.s32.totalorder %s442, %s458
      %p460 = scmp.eq.s32.totalorder %s58, 0
      %p461 = por %p459, %p460
      %s462 = ssub.s32 %s60, %s67
      %p463 = scmp.eq.s32.totalorder %s462, 0
      %s465 = sadd.s32 %s464, 1
      %s466 = scalar_select %p463, %s464, %s465
      %p469 = pneg %p463
      %p470 = scmp.eq.s32.totalorder %s52, 3
      %p471 = por %p469, %p470
      %p472 = scmp.ne.s32.totalorder %s464, %s467
      %p473 = scmp.eq.s32.totalorder %s52, 0
      %p474 = por %p472, %p473
      %p475 = scmp.ne.s32.totalorder %s464, %s467
      %p476 = scmp.eq.s32.totalorder %s57, 3
      %p477 = por %p475, %p476
      %p478 = scmp.ne.s32.totalorder %s467, %s468
      %p479 = scmp.eq.s32.totalorder %s57, 0
      %p480 = por %p478, %p479
      %p481 = scmp.ne.s32.totalorder %s467, %s468
      %p482 = scmp.eq.s32.totalorder %s58, 3
      %p483 = por %p481, %p482
      %p485 = scmp.ne.s32.totalorder %s468, %s484
      %p486 = scmp.eq.s32.totalorder %s58, 0
      %p487 = por %p485, %p486
      %s488 = ssub.s32 %s59, %s71
      %p489 = scmp.eq.s32.totalorder %s488, 0
      %s491 = sadd.s32 %s490, 1
      %s492 = scalar_select %p489, %s490, %s491
      %p495 = pneg %p489
      %p496 = scmp.eq.s32.totalorder %s52, 3
      %p497 = por %p495, %p496
      %p498 = scmp.ne.s32.totalorder %s490, %s493
      %p499 = scmp.eq.s32.totalorder %s52, 0
      %p500 = por %p498, %p499
      %p501 = scmp.ne.s32.totalorder %s490, %s493
      %p502 = scmp.eq.s32.totalorder %s57, 3
      %p503 = por %p501, %p502
      %p504 = scmp.ne.s32.totalorder %s493, %s494
      %p505 = scmp.eq.s32.totalorder %s57, 0
      %p506 = por %p504, %p505
      %p507 = scmp.ne.s32.totalorder %s493, %s494
      %p508 = scmp.eq.s32.totalorder %s58, 3
      %p509 = por %p507, %p508
      %p511 = scmp.ne.s32.totalorder %s494, %s510
      %p512 = scmp.eq.s32.totalorder %s58, 0
      %p513 = por %p511, %p512
      %p514 = scmp.le.s32.totalorder 1, %s52
      %p515 = scmp.lt.s32.totalorder %s52, 5
      %p516 = pnand %p514, %p515
      %p517 = pneg %p516
      // Predicated region
      $region9: #{tpu_custom_call.1} parent=5 // pred_check
        _
      $region10: #{tpu_custom_call.1} parent=5 // pred_check_branch
        %519 = sbr.rel (%p516) target = $region12
      $region11: #{tpu_custom_call.1} parent=5 // pred_region
        %s520 = ssub.s32 %s52, 1
      $region12: #{tpu_custom_call.1} parent=5 // pred_fallthru
        _
      %p521 = scmp.lt.s32.totalorder %s52, 4
      // Predicated region
      $region13: #{tpu_custom_call.1} parent=5 // pred_check
        %p522 = pneg %p521
      $region14: #{tpu_custom_call.1} parent=5 // pred_check_branch
        %524 = sbr.rel (%p522) target = $region16
      $region15: #{tpu_custom_call.1} parent=5 // pred_region
        // Predicated region
        $region17: #{tpu_custom_call.1} parent=15 // pred_check
          %p525 = pneg %p84
        $region18: #{tpu_custom_call.1} parent=15 // pred_check_branch
          %527 = sbr.rel (%p525) target = $region20
        $region19: #{tpu_custom_call.1} parent=15 // pred_region
          %s528 = sand.u32 %s74, 1
          %s529 = scalar_lea.sflag [#allocation4], %s528
          %s530 = sand.u32 %s74, 1
          %s531 = smul.addr %s530, 8
          %s532 = scalar_lea.vmem [#allocation3], %s531
          %s534 = ssub.s32 128, 128
          %535 = vsyncadd %s529, %s534
          %s536 = smul.addr %s59, 128
          %s537 = scalar_lea.hbm %s0, %s536
          %s539 = sshll.u32 %s532, 4
          %s540 = int_to_ptr.vmem [resolvable:$true] %s539
          %542 = dma.hbm_to_vmem [thread:$0]  %s537, 128, %s540, %s529
        $region20: #{tpu_custom_call.1} parent=15 // pred_fallthru
          _
        // Predicated region
        $region21: #{tpu_custom_call.1} parent=15 // pred_check
          %p543 = pneg %p110
        $region22: #{tpu_custom_call.1} parent=15 // pred_check_branch
          %545 = sbr.rel (%p543) target = $region24
        $region23: #{tpu_custom_call.1} parent=15 // pred_region
          %s546 = sand.u32 %s52, 1
          %s547 = scalar_lea.sflag [#allocation7], %s546
          %s548 = sand.u32 %s100, 1
          %s549 = scalar_lea.vmem [#allocation6], %s548
          %s551 = ssub.s32 16, 16
          %552 = vsyncadd %s547, %s551
          %s553 = smul.addr %s59, 16
          %s554 = scalar_lea.hbm %s1, %s553
          %s556 = sshll.u32 %s549, 4
          %s557 = int_to_ptr.vmem [resolvable:$true] %s556
          %559 = dma.hbm_to_vmem [thread:$0]  %s554, 16, %s557, %s547
        $region24: #{tpu_custom_call.1} parent=15 // pred_fallthru
          _
        // Predicated region
        $region25: #{tpu_custom_call.1} parent=15 // pred_check
          %p560 = pneg %p136
        $region26: #{tpu_custom_call.1} parent=15 // pred_check_branch
          %562 = sbr.rel (%p560) target = $region28
        $region27: #{tpu_custom_call.1} parent=15 // pred_region
          %s563 = sand.u32 %s52, 1
          %s564 = scalar_lea.sflag [#allocation7], %s563
          %s565 = sand.u32 %s126, 1
          %s566 = smul.addr %s565, 16
          %s567 = scalar_lea.vmem [#allocation8], %s566
          %s569 = ssub.s32 256, 256
          %570 = vsyncadd %s564, %s569
          %s571 = smul.addr %s60, 4
          %s572 = smul.addr %s571, 64
          %s573 = scalar_lea.hbm %s2, %s572
          %s574 = sshll.u32 %s567, 4
          %s575 = int_to_ptr.vmem [resolvable:$true] %s574
          %580 = dma.hbm_to_vmem [thread:$0]  %s573, 256, %s575, %s564, 64, 64, 4
        $region28: #{tpu_custom_call.1} parent=15 // pred_fallthru
          _
        // Predicated region
        $region29: #{tpu_custom_call.1} parent=15 // pred_check
          %p581 = pneg %p162
        $region30: #{tpu_custom_call.1} parent=15 // pred_check_branch
          %583 = sbr.rel (%p581) target = $region32
        $region31: #{tpu_custom_call.1} parent=15 // pred_region
          %s584 = sand.u32 %s52, 1
          %s585 = scalar_lea.sflag [#allocation10], %s584
          %s586 = sand.u32 %s152, 1
          %s587 = scalar_lea.vmem [#allocation9], %s586
          %s589 = ssub.s32 16, 16
          %590 = vsyncadd %s585, %s589
          %s591 = smul.addr %s60, 16
          %s592 = scalar_lea.hbm %s3, %s591
          %s594 = sshll.u32 %s587, 4
          %s595 = int_to_ptr.vmem [resolvable:$true] %s594
          %597 = dma.hbm_to_vmem [thread:$0]  %s592, 16, %s595, %s585
        $region32: #{tpu_custom_call.1} parent=15 // pred_fallthru
          _
        // Predicated region
        $region33: #{tpu_custom_call.1} parent=15 // pred_check
          %p598 = pneg %p188
        $region34: #{tpu_custom_call.1} parent=15 // pred_check_branch
          %600 = sbr.rel (%p598) target = $region36
        $region35: #{tpu_custom_call.1} parent=15 // pred_region
          %s601 = sand.u32 %s52, 1
          %s602 = scalar_lea.sflag [#allocation10], %s601
          %s603 = sand.u32 %s178, 1
          %s604 = smul.addr %s603, 16
          %s605 = scalar_lea.vmem [#allocation11], %s604
          %s607 = ssub.s32 256, 256
          %608 = vsyncadd %s602, %s607
          %s609 = smul.addr %s60, 4
          %s610 = smul.addr %s609, 64
          %s611 = scalar_lea.hbm %s4, %s610
          %s612 = sshll.u32 %s605, 4
          %s613 = int_to_ptr.vmem [resolvable:$true] %s612
          %618 = dma.hbm_to_vmem [thread:$0]  %s611, 256, %s613, %s602, 64, 64, 4
        $region36: #{tpu_custom_call.1} parent=15 // pred_fallthru
          _
        // Predicated region
        $region37: #{tpu_custom_call.1} parent=15 // pred_check
          %p619 = pneg %p214
        $region38: #{tpu_custom_call.1} parent=15 // pred_check_branch
          %621 = sbr.rel (%p619) target = $region40
        $region39: #{tpu_custom_call.1} parent=15 // pred_region
          %s622 = sand.u32 %s52, 1
          %s623 = scalar_lea.sflag [#allocation13], %s622
          %s624 = sand.u32 %s204, 1
          %s625 = scalar_lea.vmem [#allocation12], %s624
          %s627 = ssub.s32 16, 16
          %628 = vsyncadd %s623, %s627
          %s629 = smul.addr %s60, 16
          %s630 = scalar_lea.hbm %s5, %s629
          %s632 = sshll.u32 %s625, 4
          %s633 = int_to_ptr.vmem [resolvable:$true] %s632
          %635 = dma.hbm_to_vmem [thread:$0]  %s630, 16, %s633, %s623
        $region40: #{tpu_custom_call.1} parent=15 // pred_fallthru
          _
        // Predicated region
        $region41: #{tpu_custom_call.1} parent=15 // pred_check
          %p636 = pneg %p240
        $region42: #{tpu_custom_call.1} parent=15 // pred_check_branch
          %638 = sbr.rel (%p636) target = $region44
        $region43: #{tpu_custom_call.1} parent=15 // pred_region
          %s639 = sand.u32 %s52, 1
          %s640 = scalar_lea.sflag [#allocation13], %s639
          %s641 = sand.u32 %s230, 1
          %s642 = smul.addr %s641, 16
          %s643 = scalar_lea.vmem [#allocation14], %s642
          %s645 = ssub.s32 256, 256
          %646 = vsyncadd %s640, %s645
          %s647 = smul.addr %s60, 4
          %s648 = smul.addr %s647, 64
          %s649 = scalar_lea.hbm %s6, %s648
          %s650 = sshll.u32 %s643, 4
          %s651 = int_to_ptr.vmem [resolvable:$true] %s650
          %656 = dma.hbm_to_vmem [thread:$0]  %s649, 256, %s651, %s640, 64, 64, 4
        $region44: #{tpu_custom_call.1} parent=15 // pred_fallthru
          _
        // Predicated region
        $region45: #{tpu_custom_call.1} parent=15 // pred_check
          %p657 = pneg %p266
        $region46: #{tpu_custom_call.1} parent=15 // pred_check_branch
          %659 = sbr.rel (%p657) target = $region48
        $region47: #{tpu_custom_call.1} parent=15 // pred_region
          %s660 = sand.u32 %s52, 1
          %s661 = scalar_lea.sflag [#allocation16], %s660
          %s662 = sand.u32 %s256, 1
          %s663 = scalar_lea.vmem [#allocation15], %s662
          %s665 = ssub.s32 16, 16
          %666 = vsyncadd %s661, %s665
          %s667 = smul.addr %s60, 16
          %s668 = scalar_lea.hbm %s7, %s667
          %s670 = sshll.u32 %s663, 4
          %s671 = int_to_ptr.vmem [resolvable:$true] %s670
          %673 = dma.hbm_to_vmem [thread:$0]  %s668, 16, %s671, %s661
        $region48: #{tpu_custom_call.1} parent=15 // pred_fallthru
          _
        // Predicated region
        $region49: #{tpu_custom_call.1} parent=15 // pred_check
          %p674 = pneg %p292
        $region50: #{tpu_custom_call.1} parent=15 // pred_check_branch
          %676 = sbr.rel (%p674) target = $region52
        $region51: #{tpu_custom_call.1} parent=15 // pred_region
          %s677 = sand.u32 %s52, 1
          %s678 = scalar_lea.sflag [#allocation16], %s677
          %s679 = sand.u32 %s282, 1
          %s680 = smul.addr %s679, 16
          %s681 = scalar_lea.vmem [#allocation17], %s680
          %s683 = ssub.s32 256, 256
          %684 = vsyncadd %s678, %s683
          %s685 = smul.addr %s60, 4
          %s686 = smul.addr %s685, 64
          %s687 = scalar_lea.hbm %s8, %s686
          %s688 = sshll.u32 %s681, 4
          %s689 = int_to_ptr.vmem [resolvable:$true] %s688
          %694 = dma.hbm_to_vmem [thread:$0]  %s687, 256, %s689, %s678, 64, 64, 4
        $region52: #{tpu_custom_call.1} parent=15 // pred_fallthru
          _
        // Predicated region
        $region53: #{tpu_custom_call.1} parent=15 // pred_check
          %p695 = pneg %p318
        $region54: #{tpu_custom_call.1} parent=15 // pred_check_branch
          %697 = sbr.rel (%p695) target = $region56
        $region55: #{tpu_custom_call.1} parent=15 // pred_region
          %s698 = sand.u32 %s52, 1
          %s699 = scalar_lea.sflag [#allocation19], %s698
          %s700 = sand.u32 %s308, 1
          %s701 = scalar_lea.vmem [#allocation18], %s700
          %s703 = ssub.s32 16, 16
          %704 = vsyncadd %s699, %s703
          %s705 = smul.addr %s60, 16
          %s706 = scalar_lea.hbm %s9, %s705
          %s708 = sshll.u32 %s701, 4
          %s709 = int_to_ptr.vmem [resolvable:$true] %s708
          %711 = dma.hbm_to_vmem [thread:$0]  %s706, 16, %s709, %s699
        $region56: #{tpu_custom_call.1} parent=15 // pred_fallthru
          _
        // Predicated region
        $region57: #{tpu_custom_call.1} parent=15 // pred_check
          %p712 = pneg %p344
        $region58: #{tpu_custom_call.1} parent=15 // pred_check_branch
          %714 = sbr.rel (%p712) target = $region60
        $region59: #{tpu_custom_call.1} parent=15 // pred_region
          %s715 = sand.u32 %s52, 1
          %s716 = scalar_lea.sflag [#allocation19], %s715
          %s717 = sand.u32 %s334, 1
          %s718 = scalar_lea.vmem [#allocation20], %s717
          %s720 = ssub.s32 16, 16
          %721 = vsyncadd %s716, %s720
          %s722 = smul.addr %s60, 16
          %s723 = scalar_lea.hbm %s10, %s722
          %s725 = sshll.u32 %s718, 4
          %s726 = int_to_ptr.vmem [resolvable:$true] %s725
          %728 = dma.hbm_to_vmem [thread:$0]  %s723, 16, %s726, %s716
        $region60: #{tpu_custom_call.1} parent=15 // pred_fallthru
          _
        // Predicated region
        $region61: #{tpu_custom_call.1} parent=15 // pred_check
          %p729 = pneg %p370
        $region62: #{tpu_custom_call.1} parent=15 // pred_check_branch
          %731 = sbr.rel (%p729) target = $region64
        $region63: #{tpu_custom_call.1} parent=15 // pred_region
          %s732 = sand.u32 %s52, 1
          %s733 = scalar_lea.sflag [#allocation22], %s732
          %s734 = sand.u32 %s360, 1
          %s735 = scalar_lea.vmem [#allocation21], %s734
          %s737 = ssub.s32 16, 16
          %738 = vsyncadd %s733, %s737
          %s739 = smul.addr %s60, 16
          %s740 = scalar_lea.hbm %s11, %s739
          %s742 = sshll.u32 %s735, 4
          %s743 = int_to_ptr.vmem [resolvable:$true] %s742
          %745 = dma.hbm_to_vmem [thread:$0]  %s740, 16, %s743, %s733
        $region64: #{tpu_custom_call.1} parent=15 // pred_fallthru
          _
        // Predicated region
        $region65: #{tpu_custom_call.1} parent=15 // pred_check
          %p746 = pneg %p396
        $region66: #{tpu_custom_call.1} parent=15 // pred_check_branch
          %748 = sbr.rel (%p746) target = $region68
        $region67: #{tpu_custom_call.1} parent=15 // pred_region
          %s749 = sand.u32 %s52, 1
          %s750 = scalar_lea.sflag [#allocation22], %s749
          %s751 = sand.u32 %s386, 1
          %s752 = smul.addr %s751, 16
          %s753 = scalar_lea.vmem [#allocation23], %s752
          %s755 = ssub.s32 256, 256
          %756 = vsyncadd %s750, %s755
          %s757 = smul.addr %s60, 4
          %s758 = smul.addr %s757, 64
          %s759 = scalar_lea.hbm %s12, %s758
          %s760 = sshll.u32 %s753, 4
          %s761 = int_to_ptr.vmem [resolvable:$true] %s760
          %766 = dma.hbm_to_vmem [thread:$0]  %s759, 256, %s761, %s750, 64, 64, 4
        $region68: #{tpu_custom_call.1} parent=15 // pred_fallthru
          _
        // Predicated region
        $region69: #{tpu_custom_call.1} parent=15 // pred_check
          %p767 = pneg %p422
        $region70: #{tpu_custom_call.1} parent=15 // pred_check_branch
          %769 = sbr.rel (%p767) target = $region72
        $region71: #{tpu_custom_call.1} parent=15 // pred_region
          %s770 = sand.u32 %s52, 1
          %s771 = scalar_lea.sflag [#allocation25], %s770
          %s772 = sand.u32 %s412, 1
          %s773 = scalar_lea.vmem [#allocation24], %s772
          %s775 = ssub.s32 16, 16
          %776 = vsyncadd %s771, %s775
          %s777 = smul.addr %s60, 16
          %s778 = scalar_lea.hbm %s13, %s777
          %s780 = sshll.u32 %s773, 4
          %s781 = int_to_ptr.vmem [resolvable:$true] %s780
          %783 = dma.hbm_to_vmem [thread:$0]  %s778, 16, %s781, %s771
        $region72: #{tpu_custom_call.1} parent=15 // pred_fallthru
          _
        // Predicated region
        $region73: #{tpu_custom_call.1} parent=15 // pred_check
          %p784 = pneg %p448
        $region74: #{tpu_custom_call.1} parent=15 // pred_check_branch
          %786 = sbr.rel (%p784) target = $region76
        $region75: #{tpu_custom_call.1} parent=15 // pred_region
          %s787 = sand.u32 %s52, 1
          %s788 = scalar_lea.sflag [#allocation25], %s787
          %s789 = sand.u32 %s438, 1
          %s790 = smul.addr %s789, 64
          %s791 = scalar_lea.vmem [#allocation26], %s790
          %s793 = ssub.s32 1024, 1024
          %794 = vsyncadd %s788, %s793
          %s795 = smul.addr %s60, 16
          %s796 = smul.addr %s795, 64
          %s797 = scalar_lea.hbm %s14, %s796
          %s798 = sshll.u32 %s791, 4
          %s799 = int_to_ptr.vmem [resolvable:$true] %s798
          %804 = dma.hbm_to_vmem [thread:$0]  %s797, 1024, %s799, %s788, 64, 64, 4
        $region76: #{tpu_custom_call.1} parent=15 // pred_fallthru
          _
        // Predicated region
        $region77: #{tpu_custom_call.1} parent=15 // pred_check
          %p805 = pneg %p474
        $region78: #{tpu_custom_call.1} parent=15 // pred_check_branch
          %807 = sbr.rel (%p805) target = $region80
        $region79: #{tpu_custom_call.1} parent=15 // pred_region
          %s808 = sand.u32 %s464, 1
          %s809 = scalar_lea.sflag [#allocation28], %s808
          %s810 = sand.u32 %s464, 1
          %s811 = scalar_lea.vmem [#allocation27], %s810
          %s813 = ssub.s32 16, 16
          %814 = vsyncadd %s809, %s813
          %s815 = smul.addr %s60, 16
          %s816 = scalar_lea.hbm %s15, %s815
          %s818 = sshll.u32 %s811, 4
          %s819 = int_to_ptr.vmem [resolvable:$true] %s818
          %821 = dma.hbm_to_vmem [thread:$0]  %s816, 16, %s819, %s809
        $region80: #{tpu_custom_call.1} parent=15 // pred_fallthru
          _
      $region16: #{tpu_custom_call.1} parent=5 // pred_fallthru
        _
      %p822 = scmp.le.s32.totalorder 1, %s52
      %p823 = scmp.lt.s32.totalorder %s52, 5
      %p824 = pnand %p822, %p823
      %p825 = pneg %p824
      // Predicated region
      $region81: #{tpu_custom_call.1} parent=5 // pred_check
        _
      $region82: #{tpu_custom_call.1} parent=5 // pred_check_branch
        %827 = sbr.rel (%p824) target = $region84
      $region83: #{tpu_custom_call.1} parent=5 // pred_region
        %s828 = ssub.s32 %s52, 1
        %s829 = sand.u32 %s77, 1
        %s830 = scalar_lea.sflag [#allocation4], %s829
        %s831 = sand.u32 %s77, 1
        %s832 = smul.addr %s831, 8
        %s833 = scalar_lea.vmem [#allocation3], %s832
        // Predicated region
        $region85: #{tpu_custom_call.1} parent=83 // pred_check
          %p834 = pneg %p90
        $region86: #{tpu_custom_call.1} parent=83 // pred_check_branch
          %836 = sbr.rel (%p834) target = $region88
        $region87: #{tpu_custom_call.1} parent=83 // pred_region
          %837 = dma.done %s830, 128
        $region88: #{tpu_custom_call.1} parent=83 // pred_fallthru
          _
        %s838 = sand.u32 %s57, 1
        %s839 = scalar_lea.sflag [#allocation7], %s838
        %s840 = sand.u32 %s103, 1
        %s841 = scalar_lea.vmem [#allocation6], %s840
        // Predicated region
        $region89: #{tpu_custom_call.1} parent=83 // pred_check
          %p842 = pneg %p116
        $region90: #{tpu_custom_call.1} parent=83 // pred_check_branch
          %844 = sbr.rel (%p842) target = $region92
        $region91: #{tpu_custom_call.1} parent=83 // pred_region
          %845 = dma.done %s839, 16
        $region92: #{tpu_custom_call.1} parent=83 // pred_fallthru
          _
        %s846 = sand.u32 %s57, 1
        %s847 = scalar_lea.sflag [#allocation7], %s846
        %s848 = sand.u32 %s129, 1
        %s849 = smul.addr %s848, 16
        %s850 = scalar_lea.vmem [#allocation8], %s849
        // Predicated region
        $region93: #{tpu_custom_call.1} parent=83 // pred_check
          %p851 = pneg %p142
        $region94: #{tpu_custom_call.1} parent=83 // pred_check_branch
          %853 = sbr.rel (%p851) target = $region96
        $region95: #{tpu_custom_call.1} parent=83 // pred_region
          %854 = dma.done %s847, 256
        $region96: #{tpu_custom_call.1} parent=83 // pred_fallthru
          _
        %s855 = sand.u32 %s57, 1
        %s856 = scalar_lea.sflag [#allocation10], %s855
        %s857 = sand.u32 %s155, 1
        %s858 = scalar_lea.vmem [#allocation9], %s857
        // Predicated region
        $region97: #{tpu_custom_call.1} parent=83 // pred_check
          %p859 = pneg %p168
        $region98: #{tpu_custom_call.1} parent=83 // pred_check_branch
          %861 = sbr.rel (%p859) target = $region100
        $region99: #{tpu_custom_call.1} parent=83 // pred_region
          %862 = dma.done %s856, 16
        $region100: #{tpu_custom_call.1} parent=83 // pred_fallthru
          _
        %s863 = sand.u32 %s57, 1
        %s864 = scalar_lea.sflag [#allocation10], %s863
        %s865 = sand.u32 %s181, 1
        %s866 = smul.addr %s865, 16
        %s867 = scalar_lea.vmem [#allocation11], %s866
        // Predicated region
        $region101: #{tpu_custom_call.1} parent=83 // pred_check
          %p868 = pneg %p194
        $region102: #{tpu_custom_call.1} parent=83 // pred_check_branch
          %870 = sbr.rel (%p868) target = $region104
        $region103: #{tpu_custom_call.1} parent=83 // pred_region
          %871 = dma.done %s864, 256
        $region104: #{tpu_custom_call.1} parent=83 // pred_fallthru
          _
        %s872 = sand.u32 %s57, 1
        %s873 = scalar_lea.sflag [#allocation13], %s872
        %s874 = sand.u32 %s207, 1
        %s875 = scalar_lea.vmem [#allocation12], %s874
        // Predicated region
        $region105: #{tpu_custom_call.1} parent=83 // pred_check
          %p876 = pneg %p220
        $region106: #{tpu_custom_call.1} parent=83 // pred_check_branch
          %878 = sbr.rel (%p876) target = $region108
        $region107: #{tpu_custom_call.1} parent=83 // pred_region
          %879 = dma.done %s873, 16
        $region108: #{tpu_custom_call.1} parent=83 // pred_fallthru
          _
        %s880 = sand.u32 %s57, 1
        %s881 = scalar_lea.sflag [#allocation13], %s880
        %s882 = sand.u32 %s233, 1
        %s883 = smul.addr %s882, 16
        %s884 = scalar_lea.vmem [#allocation14], %s883
        // Predicated region
        $region109: #{tpu_custom_call.1} parent=83 // pred_check
          %p885 = pneg %p246
        $region110: #{tpu_custom_call.1} parent=83 // pred_check_branch
          %887 = sbr.rel (%p885) target = $region112
        $region111: #{tpu_custom_call.1} parent=83 // pred_region
          %888 = dma.done %s881, 256
        $region112: #{tpu_custom_call.1} parent=83 // pred_fallthru
          _
        %s889 = sand.u32 %s57, 1
        %s890 = scalar_lea.sflag [#allocation16], %s889
        %s891 = sand.u32 %s259, 1
        %s892 = scalar_lea.vmem [#allocation15], %s891
        // Predicated region
        $region113: #{tpu_custom_call.1} parent=83 // pred_check
          %p893 = pneg %p272
        $region114: #{tpu_custom_call.1} parent=83 // pred_check_branch
          %895 = sbr.rel (%p893) target = $region116
        $region115: #{tpu_custom_call.1} parent=83 // pred_region
          %896 = dma.done %s890, 16
        $region116: #{tpu_custom_call.1} parent=83 // pred_fallthru
          _
        %s897 = sand.u32 %s57, 1
        %s898 = scalar_lea.sflag [#allocation16], %s897
        %s899 = sand.u32 %s285, 1
        %s900 = smul.addr %s899, 16
        %s901 = scalar_lea.vmem [#allocation17], %s900
        // Predicated region
        $region117: #{tpu_custom_call.1} parent=83 // pred_check
          %p902 = pneg %p298
        $region118: #{tpu_custom_call.1} parent=83 // pred_check_branch
          %904 = sbr.rel (%p902) target = $region120
        $region119: #{tpu_custom_call.1} parent=83 // pred_region
          %905 = dma.done %s898, 256
        $region120: #{tpu_custom_call.1} parent=83 // pred_fallthru
          _
        %s906 = sand.u32 %s57, 1
        %s907 = scalar_lea.sflag [#allocation19], %s906
        %s908 = sand.u32 %s311, 1
        %s909 = scalar_lea.vmem [#allocation18], %s908
        // Predicated region
        $region121: #{tpu_custom_call.1} parent=83 // pred_check
          %p910 = pneg %p324
        $region122: #{tpu_custom_call.1} parent=83 // pred_check_branch
          %912 = sbr.rel (%p910) target = $region124
        $region123: #{tpu_custom_call.1} parent=83 // pred_region
          %913 = dma.done %s907, 16
        $region124: #{tpu_custom_call.1} parent=83 // pred_fallthru
          _
        %s914 = sand.u32 %s57, 1
        %s915 = scalar_lea.sflag [#allocation19], %s914
        %s916 = sand.u32 %s337, 1
        %s917 = scalar_lea.vmem [#allocation20], %s916
        // Predicated region
        $region125: #{tpu_custom_call.1} parent=83 // pred_check
          %p918 = pneg %p350
        $region126: #{tpu_custom_call.1} parent=83 // pred_check_branch
          %920 = sbr.rel (%p918) target = $region128
        $region127: #{tpu_custom_call.1} parent=83 // pred_region
          %921 = dma.done %s915, 16
        $region128: #{tpu_custom_call.1} parent=83 // pred_fallthru
          _
        %s922 = sand.u32 %s57, 1
        %s923 = scalar_lea.sflag [#allocation22], %s922
        %s924 = sand.u32 %s363, 1
        %s925 = scalar_lea.vmem [#allocation21], %s924
        // Predicated region
        $region129: #{tpu_custom_call.1} parent=83 // pred_check
          %p926 = pneg %p376
        $region130: #{tpu_custom_call.1} parent=83 // pred_check_branch
          %928 = sbr.rel (%p926) target = $region132
        $region131: #{tpu_custom_call.1} parent=83 // pred_region
          %929 = dma.done %s923, 16
        $region132: #{tpu_custom_call.1} parent=83 // pred_fallthru
          _
        %s930 = sand.u32 %s57, 1
        %s931 = scalar_lea.sflag [#allocation22], %s930
        %s932 = sand.u32 %s389, 1
        %s933 = smul.addr %s932, 16
        %s934 = scalar_lea.vmem [#allocation23], %s933
        // Predicated region
        $region133: #{tpu_custom_call.1} parent=83 // pred_check
          %p935 = pneg %p402
        $region134: #{tpu_custom_call.1} parent=83 // pred_check_branch
          %937 = sbr.rel (%p935) target = $region136
        $region135: #{tpu_custom_call.1} parent=83 // pred_region
          %938 = dma.done %s931, 256
        $region136: #{tpu_custom_call.1} parent=83 // pred_fallthru
          _
        %s939 = sand.u32 %s57, 1
        %s940 = scalar_lea.sflag [#allocation25], %s939
        %s941 = sand.u32 %s415, 1
        %s942 = scalar_lea.vmem [#allocation24], %s941
        // Predicated region
        $region137: #{tpu_custom_call.1} parent=83 // pred_check
          %p943 = pneg %p428
        $region138: #{tpu_custom_call.1} parent=83 // pred_check_branch
          %945 = sbr.rel (%p943) target = $region140
        $region139: #{tpu_custom_call.1} parent=83 // pred_region
          %946 = dma.done %s940, 16
        $region140: #{tpu_custom_call.1} parent=83 // pred_fallthru
          _
        %s947 = sand.u32 %s57, 1
        %s948 = scalar_lea.sflag [#allocation25], %s947
        %s949 = sand.u32 %s441, 1
        %s950 = smul.addr %s949, 64
        %s951 = scalar_lea.vmem [#allocation26], %s950
        // Predicated region
        $region141: #{tpu_custom_call.1} parent=83 // pred_check
          %p952 = pneg %p454
        $region142: #{tpu_custom_call.1} parent=83 // pred_check_branch
          %954 = sbr.rel (%p952) target = $region144
        $region143: #{tpu_custom_call.1} parent=83 // pred_region
          %955 = dma.done %s948, 1024
        $region144: #{tpu_custom_call.1} parent=83 // pred_fallthru
          _
        %s956 = sand.u32 %s467, 1
        %s957 = scalar_lea.sflag [#allocation28], %s956
        %s958 = sand.u32 %s467, 1
        %s959 = scalar_lea.vmem [#allocation27], %s958
        // Predicated region
        $region145: #{tpu_custom_call.1} parent=83 // pred_check
          %p960 = pneg %p480
        $region146: #{tpu_custom_call.1} parent=83 // pred_check_branch
          %962 = sbr.rel (%p960) target = $region148
        $region147: #{tpu_custom_call.1} parent=83 // pred_region
          %963 = dma.done %s957, 16
        $region148: #{tpu_custom_call.1} parent=83 // pred_fallthru
          _
        %s964 = sand.u32 %s77, 1
        %s965 = scalar_lea.sflag [#allocation4], %s964
        %s966 = sand.u32 %s77, 1
        %s967 = smul.addr %s966, 8
        %s968 = scalar_lea.vmem [#allocation3], %s967
        %p969 = pneg %p90
        %p970 = pneg %p87
        %s971 = sand.u32 %s57, 1
        %s972 = scalar_lea.sflag [#allocation7], %s971
        %s973 = sand.u32 %s103, 1
        %s974 = scalar_lea.vmem [#allocation6], %s973
        %p975 = pneg %p116
        %p976 = pneg %p113
        %s977 = sand.u32 %s57, 1
        %s978 = scalar_lea.sflag [#allocation7], %s977
        %s979 = sand.u32 %s129, 1
        %s980 = smul.addr %s979, 16
        %s981 = scalar_lea.vmem [#allocation8], %s980
        %p982 = pneg %p142
        %p983 = pneg %p139
        %s984 = sand.u32 %s57, 1
        %s985 = scalar_lea.sflag [#allocation10], %s984
        %s986 = sand.u32 %s155, 1
        %s987 = scalar_lea.vmem [#allocation9], %s986
        %p988 = pneg %p168
        %p989 = pneg %p165
        %s990 = sand.u32 %s57, 1
        %s991 = scalar_lea.sflag [#allocation10], %s990
        %s992 = sand.u32 %s181, 1
        %s993 = smul.addr %s992, 16
        %s994 = scalar_lea.vmem [#allocation11], %s993
        %p995 = pneg %p194
        %p996 = pneg %p191
        %s997 = sand.u32 %s57, 1
        %s998 = scalar_lea.sflag [#allocation13], %s997
        %s999 = sand.u32 %s207, 1
        %s1000 = scalar_lea.vmem [#allocation12], %s999
        %p1001 = pneg %p220
        %p1002 = pneg %p217
        %s1003 = sand.u32 %s57, 1
        %s1004 = scalar_lea.sflag [#allocation13], %s1003
        %s1005 = sand.u32 %s233, 1
        %s1006 = smul.addr %s1005, 16
        %s1007 = scalar_lea.vmem [#allocation14], %s1006
        %p1008 = pneg %p246
        %p1009 = pneg %p243
        %s1010 = sand.u32 %s57, 1
        %s1011 = scalar_lea.sflag [#allocation16], %s1010
        %s1012 = sand.u32 %s259, 1
        %s1013 = scalar_lea.vmem [#allocation15], %s1012
        %p1014 = pneg %p272
        %p1015 = pneg %p269
        %s1016 = sand.u32 %s57, 1
        %s1017 = scalar_lea.sflag [#allocation16], %s1016
        %s1018 = sand.u32 %s285, 1
        %s1019 = smul.addr %s1018, 16
        %s1020 = scalar_lea.vmem [#allocation17], %s1019
        %p1021 = pneg %p298
        %p1022 = pneg %p295
        %s1023 = sand.u32 %s57, 1
        %s1024 = scalar_lea.sflag [#allocation19], %s1023
        %s1025 = sand.u32 %s311, 1
        %s1026 = scalar_lea.vmem [#allocation18], %s1025
        %p1027 = pneg %p324
        %p1028 = pneg %p321
        %s1029 = sand.u32 %s57, 1
        %s1030 = scalar_lea.sflag [#allocation19], %s1029
        %s1031 = sand.u32 %s337, 1
        %s1032 = scalar_lea.vmem [#allocation20], %s1031
        %p1033 = pneg %p350
        %p1034 = pneg %p347
        %s1035 = sand.u32 %s57, 1
        %s1036 = scalar_lea.sflag [#allocation22], %s1035
        %s1037 = sand.u32 %s363, 1
        %s1038 = scalar_lea.vmem [#allocation21], %s1037
        %p1039 = pneg %p376
        %p1040 = pneg %p373
        %s1041 = sand.u32 %s57, 1
        %s1042 = scalar_lea.sflag [#allocation22], %s1041
        %s1043 = sand.u32 %s389, 1
        %s1044 = smul.addr %s1043, 16
        %s1045 = scalar_lea.vmem [#allocation23], %s1044
        %p1046 = pneg %p402
        %p1047 = pneg %p399
        %s1048 = sand.u32 %s57, 1
        %s1049 = scalar_lea.sflag [#allocation25], %s1048
        %s1050 = sand.u32 %s415, 1
        %s1051 = scalar_lea.vmem [#allocation24], %s1050
        %p1052 = pneg %p428
        %p1053 = pneg %p425
        %s1054 = sand.u32 %s57, 1
        %s1055 = scalar_lea.sflag [#allocation25], %s1054
        %s1056 = sand.u32 %s441, 1
        %s1057 = smul.addr %s1056, 64
        %s1058 = scalar_lea.vmem [#allocation26], %s1057
        %p1059 = pneg %p454
        %p1060 = pneg %p451
        %s1061 = sand.u32 %s467, 1
        %s1062 = scalar_lea.sflag [#allocation28], %s1061
        %s1063 = sand.u32 %s467, 1
        %s1064 = scalar_lea.vmem [#allocation27], %s1063
        %p1065 = pneg %p480
        %p1066 = pneg %p477
        %p1067 = pneg %p506
        %p1068 = pneg %p503
        %s1069 = sand.u32 %s493, 1
        %s1070 = scalar_lea.sflag [#allocation5], %s1069
        %s1071 = sand.u32 %s493, 1
        %s1072 = smul.addr %s1071, 8
        %s1073 = scalar_lea.vmem [#allocation29], %s1072
        %p1075 = scmp.eq.s32.totalorder %s62, 0
        // Predicated region
        $region149: #{tpu_custom_call.1} parent=83 // pred_check
          %p1076 = pneg %p1075
        $region150: #{tpu_custom_call.1} parent=83 // pred_check_branch
          %1078 = sbr.rel (%p1076) target = $region152
        $region151: #{tpu_custom_call.1} parent=83 // pred_region
          %v1079 = vld [vmem:[%s833] sm:$0xff]
          %vm1080 = vcmask 261120
          %1081 = vst.msk [vmem:[#allocation2] sm:$0xff] %vm1080, %v1079
        $region152: #{tpu_custom_call.1} parent=83 // pred_fallthru
          _
        %v1082 = vld [vmem:[#allocation2] sm:$0xff]
        %v1083 = vld [vmem:[%s850] sm:$0xf]
        %v1084 = vld [vmem:[%s850 + $0x4] sm:$0xf]
        %v1085 = vld [vmem:[%s850 + $0x8] sm:$0xf]
        %v1086 = vld [vmem:[%s850 + $0xc] sm:$0xf]
        %v1087 = vld [vmem:[%s858] sm:$0x1]
        %v1088 = vld [vmem:[%s867] sm:$0xf]
        %v1089 = vld [vmem:[%s867 + $0x4] sm:$0xf]
        %v1090 = vld [vmem:[%s867 + $0x8] sm:$0xf]
        %v1091 = vld [vmem:[%s867 + $0xc] sm:$0xf]
        %v1092 = vld [vmem:[%s875] sm:$0x1]
        %v1093 = vld [vmem:[%s884] sm:$0xf]
        %v1094 = vld [vmem:[%s884 + $0x4] sm:$0xf]
        %v1095 = vld [vmem:[%s884 + $0x8] sm:$0xf]
        %v1096 = vld [vmem:[%s884 + $0xc] sm:$0xf]
        %v1097 = vld [vmem:[%s892] sm:$0x1]
        %v1098 = vld [vmem:[%s901] sm:$0xf]
        %v1099 = vld [vmem:[%s901 + $0x4] sm:$0xf]
        %v1100 = vld [vmem:[%s901 + $0x8] sm:$0xf]
        %v1101 = vld [vmem:[%s901 + $0xc] sm:$0xf]
        %v1102 = vld [vmem:[%s909] sm:$0x1]
        %v1103 = vld [vmem:[%s917] sm:$0x1]
        %v1104 = vld [vmem:[%s925] sm:$0x1]
        %v1105 = vld [vmem:[%s934] sm:$0xf]
        %v1106 = vld [vmem:[%s934 + $0x4] sm:$0xf]
        %v1107 = vld [vmem:[%s934 + $0x8] sm:$0xf]
        %v1108 = vld [vmem:[%s934 + $0xc] sm:$0xf]
        %v1109 = vld [vmem:[%s942] sm:$0x1]
        %v1110 = vld [vmem:[%s951] sm:$0xf]
        %v1111 = vld [vmem:[%s951 + $0x4] sm:$0xf]
        %v1112 = vld [vmem:[%s951 + $0x8] sm:$0xf]
        %v1113 = vld [vmem:[%s951 + $0xc] sm:$0xf]
        %v1114 = vld [vmem:[%s951 + $0x10] sm:$0xf]
        %v1115 = vld [vmem:[%s951 + $0x14] sm:$0xf]
        %v1116 = vld [vmem:[%s951 + $0x18] sm:$0xf]
        %v1117 = vld [vmem:[%s951 + $0x1c] sm:$0xf]
        %v1118 = vld [vmem:[%s951 + $0x20] sm:$0xf]
        %v1119 = vld [vmem:[%s951 + $0x24] sm:$0xf]
        %v1120 = vld [vmem:[%s951 + $0x28] sm:$0xf]
        %v1121 = vld [vmem:[%s951 + $0x2c] sm:$0xf]
        %v1122 = vld [vmem:[%s951 + $0x30] sm:$0xf]
        %v1123 = vld [vmem:[%s951 + $0x34] sm:$0xf]
        %v1124 = vld [vmem:[%s951 + $0x38] sm:$0xf]
        %v1125 = vld [vmem:[%s951 + $0x3c] sm:$0xf]
        %v1126 = vld [vmem:[%s959] sm:$0x1]
        %v1127 = vld [vmem:[%s841] sm:$0x1]
        %v1129 = vlaneseq
        %v1130 = vshrl.u32 %v1129, 7
        %v1131 = vsub.s32 0, %v1130
        %v1132 = vrot.slane %v1127, %v1131
        %v1134 = vpack.c.bf16 %v1082, %v1082
        %v1136 = vlaneseq
        %v1137 = vshrl.u32 %v1136, 7
        %v1138 = vsub.s32 0, %v1137
        %v1139 = vrot.slane %v1087, %v1138
        %v1145 = vunpack.c.l.b16 %v1083
        %v1146 = vunpack.c.l.b16 %v1084
        %v1147 = vunpack.c.l.b16 %v1085
        %v1148 = vunpack.c.l.b16 %v1086
        %v1149 = vpack.c.b16 %v1146, %v1145
        %v1150 = vpack.c.b16 %v1148, %v1147
        %vm1153 = vcmask 261120
        %v1155 = vsel %vm1153, %v1134, 0
        %1157 = vmatprep.subr.bf16.mxu0 0
        %1158 = vmatpush1.bf16.msra.mxu0 %v1149
        %1159 = vmatprep.subr.bf16.mxu0 0
        %1160 = vmatpush1.bf16.msra.mxu0 %v1150
        %1161 = vmatprep.subr.bf16.mxu0 0
        %1162 = vmatpush1.bf16.msra.mxu0 0
        %1163 = vmatprep.subr.bf16.mxu0 0
        %1164 = vmatpush1.bf16.msra.mxu0 0
        %1165 = vmatprep.subr.bf16.mxu0 0
        %1166 = vmatpush1.bf16.msra.mxu0 0
        %1167 = vmatprep.subr.bf16.mxu0 0
        %1168 = vmatpush1.bf16.msra.mxu0 0
        %1169 = vmatprep.subr.bf16.mxu0 0
        %1170 = vmatpush1.bf16.msra.mxu0 0
        %1171 = vmatprep.subr.bf16.mxu0 0
        %1172 = vmatpush1.bf16.msra.mxu0 0
        %1173 = vmatprep.subr.bf16.mxu0 0
        %1174 = vmatpush1.bf16.msra.mxu0 0
        %1175 = vmatprep.subr.bf16.mxu0 0
        %1176 = vmatpush1.bf16.msra.mxu0 0
        %1177 = vmatprep.subr.bf16.mxu0 0
        %1178 = vmatpush1.bf16.msra.mxu0 0
        %1179 = vmatprep.subr.bf16.mxu0 0
        %1180 = vmatpush1.bf16.msra.mxu0 0
        %1181 = vmatprep.subr.bf16.mxu0 0
        %1182 = vmatpush1.bf16.msra.mxu0 0
        %1183 = vmatprep.subr.bf16.mxu0 0
        %1184 = vmatpush1.bf16.msra.mxu0 0
        %1185 = vmatprep.subr.bf16.mxu0 0
        %1186 = vmatpush1.bf16.msra.mxu0 0
        %1187 = vmatprep.subr.bf16.mxu0 0
        %1188 = vmatpush1.bf16.msra.mxu0 0
        %1189 = vmatprep.mubr.bf16.mxu0 0
        %1190 = vmatmul.mubr.bf16.gmra.mrb[0].mxu0 %v1155
        %v1191 = vpop.f32.mrb[0].mxu0
        %v1192 = vadd.f32 %v1139, %v1191
        %v1193 = vpop.f32.mrb[0].mxu0
        %v1194 = vpop.f32.mrb[0].mxu0
        %v1195 = vpop.f32.mrb[0].mxu0
        %1196 = vdwg.mxu0
        %v1198 = vlaneseq
        %v1199 = vshrl.u32 %v1198, 7
        %v1200 = vsub.s32 0, %v1199
        %v1201 = vrot.slane %v1092, %v1200
        %v1207 = vunpack.c.l.b16 %v1088
        %v1208 = vunpack.c.l.b16 %v1089
        %v1209 = vunpack.c.l.b16 %v1090
        %v1210 = vunpack.c.l.b16 %v1091
        %v1211 = vpack.c.b16 %v1208, %v1207
        %v1212 = vpack.c.b16 %v1210, %v1209
        %1215 = vmatprep.subr.bf16.mxu0 0
        %1216 = vmatpush1.bf16.msra.mxu0 %v1211
        %1217 = vmatprep.subr.bf16.mxu0 0
        %1218 = vmatpush1.bf16.msra.mxu0 %v1212
        %1219 = vmatprep.subr.bf16.mxu0 0
        %1220 = vmatpush1.bf16.msra.mxu0 0
        %1221 = vmatprep.subr.bf16.mxu0 0
        %1222 = vmatpush1.bf16.msra.mxu0 0
        %1223 = vmatprep.subr.bf16.mxu0 0
        %1224 = vmatpush1.bf16.msra.mxu0 0
        %1225 = vmatprep.subr.bf16.mxu0 0
        %1226 = vmatpush1.bf16.msra.mxu0 0
        %1227 = vmatprep.subr.bf16.mxu0 0
        %1228 = vmatpush1.bf16.msra.mxu0 0
        %1229 = vmatprep.subr.bf16.mxu0 0
        %1230 = vmatpush1.bf16.msra.mxu0 0
        %1231 = vmatprep.subr.bf16.mxu0 0
        %1232 = vmatpush1.bf16.msra.mxu0 0
        %1233 = vmatprep.subr.bf16.mxu0 0
        %1234 = vmatpush1.bf16.msra.mxu0 0
        %1235 = vmatprep.subr.bf16.mxu0 0
        %1236 = vmatpush1.bf16.msra.mxu0 0
        %1237 = vmatprep.subr.bf16.mxu0 0
        %1238 = vmatpush1.bf16.msra.mxu0 0
        %1239 = vmatprep.subr.bf16.mxu0 0
        %1240 = vmatpush1.bf16.msra.mxu0 0
        %1241 = vmatprep.subr.bf16.mxu0 0
        %1242 = vmatpush1.bf16.msra.mxu0 0
        %1243 = vmatprep.subr.bf16.mxu0 0
        %1244 = vmatpush1.bf16.msra.mxu0 0
        %1245 = vmatprep.subr.bf16.mxu0 0
        %1246 = vmatpush1.bf16.msra.mxu0 0
        %1247 = vmatprep.mubr.bf16.mxu0 0
        %1248 = vmatmul.mubr.bf16.gmra.mrb[0].mxu0 %v1155
        %v1249 = vpop.f32.mrb[0].mxu0
        %v1250 = vadd.f32 %v1201, %v1249
        %v1251 = vpop.f32.mrb[0].mxu0
        %v1252 = vpop.f32.mrb[0].mxu0
        %v1253 = vpop.f32.mrb[0].mxu0
        %1254 = vdwg.mxu0
        %v1256 = vlaneseq
        %v1257 = vshrl.u32 %v1256, 7
        %v1258 = vsub.s32 0, %v1257
        %v1259 = vrot.slane %v1097, %v1258
        %v1265 = vunpack.c.l.b16 %v1093
        %v1266 = vunpack.c.l.b16 %v1094
        %v1267 = vunpack.c.l.b16 %v1095
        %v1268 = vunpack.c.l.b16 %v1096
        %v1269 = vpack.c.b16 %v1266, %v1265
        %v1270 = vpack.c.b16 %v1268, %v1267
        %1273 = vmatprep.subr.bf16.mxu0 0
        %1274 = vmatpush1.bf16.msra.mxu0 %v1269
        %1275 = vmatprep.subr.bf16.mxu0 0
        %1276 = vmatpush1.bf16.msra.mxu0 %v1270
        %1277 = vmatprep.subr.bf16.mxu0 0
        %1278 = vmatpush1.bf16.msra.mxu0 0
        %1279 = vmatprep.subr.bf16.mxu0 0
        %1280 = vmatpush1.bf16.msra.mxu0 0
        %1281 = vmatprep.subr.bf16.mxu0 0
        %1282 = vmatpush1.bf16.msra.mxu0 0
        %1283 = vmatprep.subr.bf16.mxu0 0
        %1284 = vmatpush1.bf16.msra.mxu0 0
        %1285 = vmatprep.subr.bf16.mxu0 0
        %1286 = vmatpush1.bf16.msra.mxu0 0
        %1287 = vmatprep.subr.bf16.mxu0 0
        %1288 = vmatpush1.bf16.msra.mxu0 0
        %1289 = vmatprep.subr.bf16.mxu0 0
        %1290 = vmatpush1.bf16.msra.mxu0 0
        %1291 = vmatprep.subr.bf16.mxu0 0
        %1292 = vmatpush1.bf16.msra.mxu0 0
        %1293 = vmatprep.subr.bf16.mxu0 0
        %1294 = vmatpush1.bf16.msra.mxu0 0
        %1295 = vmatprep.subr.bf16.mxu0 0
        %1296 = vmatpush1.bf16.msra.mxu0 0
        %1297 = vmatprep.subr.bf16.mxu0 0
        %1298 = vmatpush1.bf16.msra.mxu0 0
        %1299 = vmatprep.subr.bf16.mxu0 0
        %1300 = vmatpush1.bf16.msra.mxu0 0
        %1301 = vmatprep.subr.bf16.mxu0 0
        %1302 = vmatpush1.bf16.msra.mxu0 0
        %1303 = vmatprep.subr.bf16.mxu0 0
        %1304 = vmatpush1.bf16.msra.mxu0 0
        %1305 = vmatprep.mubr.bf16.mxu0 0
        %1306 = vmatmul.mubr.bf16.gmra.mrb[0].mxu0 %v1155
        %v1307 = vpop.f32.mrb[0].mxu0
        %v1308 = vadd.f32 %v1259, %v1307
        %v1309 = vpop.f32.mrb[0].mxu0
        %v1310 = vpop.f32.mrb[0].mxu0
        %v1311 = vpop.f32.mrb[0].mxu0
        %1312 = vdwg.mxu0
        %v1313 = vpack.c.bf16 %v1192, %v1192
        %v1314 = vpack.c.bf16 %v1250, %v1250
        %v1315 = vpack.c.bf16 %v1308, %v1308
        %vm1316 = vcmask 64512
        %v1318 = vsel %vm1316, %v1313, 0
        %v1321 = vsel %vm1316, %v1314, 0
        %1323 = vmatprep.subr.bf16.mxu0 0
        %1324 = vmatpush1.bf16.xpose.msra.mxu0 %v1321
        %1325 = vmatprep.subr.bf16.mxu0 0
        %1326 = vmatpush1.bf16.xpose.msra.mxu0 0
        %1327 = vmatprep.subr.bf16.mxu0 0
        %1328 = vmatpush1.bf16.xpose.msra.mxu0 0
        %1329 = vmatprep.subr.bf16.mxu0 0
        %1330 = vmatpush1.bf16.xpose.msra.mxu0 0
        %1331 = vmatprep.subr.bf16.mxu0 0
        %1332 = vmatpush1.bf16.xpose.msra.mxu0 0
        %1333 = vmatprep.subr.bf16.mxu0 0
        %1334 = vmatpush1.bf16.xpose.msra.mxu0 0
        %1335 = vmatprep.subr.bf16.mxu0 0
        %1336 = vmatpush1.bf16.xpose.msra.mxu0 0
        %1337 = vmatprep.subr.bf16.mxu0 0
        %1338 = vmatpush1.bf16.xpose.msra.mxu0 0
        %1339 = vmatprep.subr.bf16.mxu0 0
        %1340 = vmatpush1.bf16.xpose.msra.mxu0 0
        %1341 = vmatprep.subr.bf16.mxu0 0
        %1342 = vmatpush1.bf16.xpose.msra.mxu0 0
        %1343 = vmatprep.subr.bf16.mxu0 0
        %1344 = vmatpush1.bf16.xpose.msra.mxu0 0
        %1345 = vmatprep.subr.bf16.mxu0 0
        %1346 = vmatpush1.bf16.xpose.msra.mxu0 0
        %1347 = vmatprep.subr.bf16.mxu0 0
        %1348 = vmatpush1.bf16.xpose.msra.mxu0 0
        %1349 = vmatprep.subr.bf16.mxu0 0
        %1350 = vmatpush1.bf16.xpose.msra.mxu0 0
        %1351 = vmatprep.subr.bf16.mxu0 0
        %1352 = vmatpush1.bf16.xpose.msra.mxu0 0
        %1353 = vmatprep.subr.bf16.mxu0 0
        %1354 = vmatpush1.bf16.xpose.msra.mxu0 0
        %1355 = vmatprep.mubr.bf16.mxu0 0
        %1356 = vmatmul.mubr.bf16.gmra.mrb[0].mxu0 %v1318
        %v1357 = vpop.f32.mrb[0].mxu0
        %v1358 = vadd.f32 %v1132, %v1357
        %v1359 = vpop.f32.mrb[0].mxu0
        %v1360 = vpop.f32.mrb[0].mxu0
        %v1361 = vpop.f32.mrb[0].mxu0
        %1362 = vdwg.mxu0
        %v1363 = vsel %vm1316, %v1358, -inf
        %1364 = vmax.xlane.f32.xlu0 %v1363
        %v1365 = vpop.xlane.xlu0 %1364
        %v1366 = vsub.f32 %v1358, %v1365
        %v1367 = vmul.f32 %v1366, 1.442695
        %v1368 = vpow.pop %v1367
        %v1369 = vsel %vm1316, %v1368, 0.0
        %1370 = vadd.xlane.f32.xlu0 %v1369
        %v1371 = vpop.xlane.xlu0 %1370
        %v1372 = vrcp.pop %v1371
        %v1373 = vmul.f32 %v1368, %v1372
        %v1374 = vpack.c.bf16 %v1373, %v1373
        %v1376 = vsel %vm1316, %v1374, 0
        %vm1378 = vcmask 1043456
        %v1380 = vsel %vm1378, %v1315, 0
        %1382 = vmatprep.subr.bf16.mxu0 0
        %1383 = vmatpush1.bf16.msra.mxu0 %v1380
        %1384 = vmatprep.subr.bf16.mxu0 0
        %1385 = vmatpush1.bf16.msra.mxu0 0
        %1386 = vmatprep.subr.bf16.mxu0 0
        %1387 = vmatpush1.bf16.msra.mxu0 0
        %1388 = vmatprep.subr.bf16.mxu0 0
        %1389 = vmatpush1.bf16.msra.mxu0 0
        %1390 = vmatprep.subr.bf16.mxu0 0
        %1391 = vmatpush1.bf16.msra.mxu0 0
        %1392 = vmatprep.subr.bf16.mxu0 0
        %1393 = vmatpush1.bf16.msra.mxu0 0
        %1394 = vmatprep.subr.bf16.mxu0 0
        %1395 = vmatpush1.bf16.msra.mxu0 0
        %1396 = vmatprep.subr.bf16.mxu0 0
        %1397 = vmatpush1.bf16.msra.mxu0 0
        %1398 = vmatprep.subr.bf16.mxu0 0
        %1399 = vmatpush1.bf16.msra.mxu0 0
        %1400 = vmatprep.subr.bf16.mxu0 0
        %1401 = vmatpush1.bf16.msra.mxu0 0
        %1402 = vmatprep.subr.bf16.mxu0 0
        %1403 = vmatpush1.bf16.msra.mxu0 0
        %1404 = vmatprep.subr.bf16.mxu0 0
        %1405 = vmatpush1.bf16.msra.mxu0 0
        %1406 = vmatprep.subr.bf16.mxu0 0
        %1407 = vmatpush1.bf16.msra.mxu0 0
        %1408 = vmatprep.subr.bf16.mxu0 0
        %1409 = vmatpush1.bf16.msra.mxu0 0
        %1410 = vmatprep.subr.bf16.mxu0 0
        %1411 = vmatpush1.bf16.msra.mxu0 0
        %1412 = vmatprep.subr.bf16.mxu0 0
        %1413 = vmatpush1.bf16.msra.mxu0 0
        %1414 = vmatprep.mubr.bf16.mxu0 0
        %1415 = vmatmul.mubr.bf16.gmra.mrb[0].mxu0 %v1376
        %v1416 = vpop.f32.mrb[0].mxu0
        %v1417 = vadd.f32 0.0, %v1416
        %v1418 = vpop.f32.mrb[0].mxu0
        %v1419 = vpop.f32.mrb[0].mxu0
        %v1420 = vpop.f32.mrb[0].mxu0
        %1421 = vdwg.mxu0
        %1423 = vrot.lane.b32.xlu0 %v1313, 120
        %v1424 = vpop.permute.xlu0 %1423
        %1426 = vrot.lane.b32.xlu0 %v1314, 120
        %v1427 = vpop.permute.xlu0 %1426
        %v1429 = vsel %vm1316, %v1424, 0
        %v1432 = vsel %vm1316, %v1427, 0
        %1434 = vmatprep.subr.bf16.mxu0 0
        %1435 = vmatpush1.bf16.xpose.msra.mxu0 %v1432
        %1436 = vmatprep.subr.bf16.mxu0 0
        %1437 = vmatpush1.bf16.xpose.msra.mxu0 0
        %1438 = vmatprep.subr.bf16.mxu0 0
        %1439 = vmatpush1.bf16.xpose.msra.mxu0 0
        %1440 = vmatprep.subr.bf16.mxu0 0
        %1441 = vmatpush1.bf16.xpose.msra.mxu0 0
        %1442 = vmatprep.subr.bf16.mxu0 0
        %1443 = vmatpush1.bf16.xpose.msra.mxu0 0
        %1444 = vmatprep.subr.bf16.mxu0 0
        %1445 = vmatpush1.bf16.xpose.msra.mxu0 0
        %1446 = vmatprep.subr.bf16.mxu0 0
        %1447 = vmatpush1.bf16.xpose.msra.mxu0 0
        %1448 = vmatprep.subr.bf16.mxu0 0
        %1449 = vmatpush1.bf16.xpose.msra.mxu0 0
        %1450 = vmatprep.subr.bf16.mxu0 0
        %1451 = vmatpush1.bf16.xpose.msra.mxu0 0
        %1452 = vmatprep.subr.bf16.mxu0 0
        %1453 = vmatpush1.bf16.xpose.msra.mxu0 0
        %1454 = vmatprep.subr.bf16.mxu0 0
        %1455 = vmatpush1.bf16.xpose.msra.mxu0 0
        %1456 = vmatprep.subr.bf16.mxu0 0
        %1457 = vmatpush1.bf16.xpose.msra.mxu0 0
        %1458 = vmatprep.subr.bf16.mxu0 0
        %1459 = vmatpush1.bf16.xpose.msra.mxu0 0
        %1460 = vmatprep.subr.bf16.mxu0 0
        %1461 = vmatpush1.bf16.xpose.msra.mxu0 0
        %1462 = vmatprep.subr.bf16.mxu0 0
        %1463 = vmatpush1.bf16.xpose.msra.mxu0 0
        %1464 = vmatprep.subr.bf16.mxu0 0
        %1465 = vmatpush1.bf16.xpose.msra.mxu0 0
        %1466 = vmatprep.mubr.bf16.mxu0 0
        %1467 = vmatmul.mubr.bf16.gmra.mrb[0].mxu0 %v1429
        %v1468 = vpop.f32.mrb[0].mxu0
        %v1469 = vadd.f32 %v1132, %v1468
        %v1470 = vpop.f32.mrb[0].mxu0
        %v1471 = vpop.f32.mrb[0].mxu0
        %v1472 = vpop.f32.mrb[0].mxu0
        %1473 = vdwg.mxu0
        %v1474 = vsel %vm1316, %v1469, -inf
        %1475 = vmax.xlane.f32.xlu0 %v1474
        %v1476 = vpop.xlane.xlu0 %1475
        %v1477 = vsub.f32 %v1469, %v1476
        %v1478 = vmul.f32 %v1477, 1.442695
        %v1479 = vpow.pop %v1478
        %v1480 = vsel %vm1316, %v1479, 0.0
        %1481 = vadd.xlane.f32.xlu0 %v1480
        %v1482 = vpop.xlane.xlu0 %1481
        %v1483 = vrcp.pop %v1482
        %v1484 = vmul.f32 %v1479, %v1483
        %v1485 = vpack.c.bf16 %v1484, %v1484
        %1487 = vrot.lane.b32.xlu0 %v1315, 120
        %v1488 = vpop.permute.xlu0 %1487
        %v1490 = vsel %vm1316, %v1485, 0
        %v1493 = vsel %vm1378, %v1488, 0
        %1495 = vmatprep.subr.bf16.mxu0 0
        %1496 = vmatpush1.bf16.msra.mxu0 %v1493
        %1497 = vmatprep.subr.bf16.mxu0 0
        %1498 = vmatpush1.bf16.msra.mxu0 0
        %1499 = vmatprep.subr.bf16.mxu0 0
        %1500 = vmatpush1.bf16.msra.mxu0 0
        %1501 = vmatprep.subr.bf16.mxu0 0
        %1502 = vmatpush1.bf16.msra.mxu0 0
        %1503 = vmatprep.subr.bf16.mxu0 0
        %1504 = vmatpush1.bf16.msra.mxu0 0
        %1505 = vmatprep.subr.bf16.mxu0 0
        %1506 = vmatpush1.bf16.msra.mxu0 0
        %1507 = vmatprep.subr.bf16.mxu0 0
        %1508 = vmatpush1.bf16.msra.mxu0 0
        %1509 = vmatprep.subr.bf16.mxu0 0
        %1510 = vmatpush1.bf16.msra.mxu0 0
        %1511 = vmatprep.subr.bf16.mxu0 0
        %1512 = vmatpush1.bf16.msra.mxu0 0
        %1513 = vmatprep.subr.bf16.mxu0 0
        %1514 = vmatpush1.bf16.msra.mxu0 0
        %1515 = vmatprep.subr.bf16.mxu0 0
        %1516 = vmatpush1.bf16.msra.mxu0 0
        %1517 = vmatprep.subr.bf16.mxu0 0
        %1518 = vmatpush1.bf16.msra.mxu0 0
        %1519 = vmatprep.subr.bf16.mxu0 0
        %1520 = vmatpush1.bf16.msra.mxu0 0
        %1521 = vmatprep.subr.bf16.mxu0 0
        %1522 = vmatpush1.bf16.msra.mxu0 0
        %1523 = vmatprep.subr.bf16.mxu0 0
        %1524 = vmatpush1.bf16.msra.mxu0 0
        %1525 = vmatprep.subr.bf16.mxu0 0
        %1526 = vmatpush1.bf16.msra.mxu0 0
        %1527 = vmatprep.mubr.bf16.mxu0 0
        %1528 = vmatmul.mubr.bf16.gmra.mrb[0].mxu0 %v1490
        %v1529 = vpop.f32.mrb[0].mxu0
        %v1530 = vadd.f32 0.0, %v1529
        %v1531 = vpop.f32.mrb[0].mxu0
        %v1532 = vpop.f32.mrb[0].mxu0
        %v1533 = vpop.f32.mrb[0].mxu0
        %1534 = vdwg.mxu0
        %1535 = vrot.lane.b32.xlu0 %v1313, 112
        %v1536 = vpop.permute.xlu0 %1535
        %1537 = vrot.lane.b32.xlu0 %v1314, 112
        %v1538 = vpop.permute.xlu0 %1537
        %v1540 = vsel %vm1316, %v1536, 0
        %v1543 = vsel %vm1316, %v1538, 0
        %1545 = vmatprep.subr.bf16.mxu0 0
        %1546 = vmatpush1.bf16.xpose.msra.mxu0 %v1543
        %1547 = vmatprep.subr.bf16.mxu0 0
        %1548 = vmatpush1.bf16.xpose.msra.mxu0 0
        %1549 = vmatprep.subr.bf16.mxu0 0
        %1550 = vmatpush1.bf16.xpose.msra.mxu0 0
        %1551 = vmatprep.subr.bf16.mxu0 0
        %1552 = vmatpush1.bf16.xpose.msra.mxu0 0
        %1553 = vmatprep.subr.bf16.mxu0 0
        %1554 = vmatpush1.bf16.xpose.msra.mxu0 0
        %1555 = vmatprep.subr.bf16.mxu0 0
        %1556 = vmatpush1.bf16.xpose.msra.mxu0 0
        %1557 = vmatprep.subr.bf16.mxu0 0
        %1558 = vmatpush1.bf16.xpose.msra.mxu0 0
        %1559 = vmatprep.subr.bf16.mxu0 0
        %1560 = vmatpush1.bf16.xpose.msra.mxu0 0
        %1561 = vmatprep.subr.bf16.mxu0 0
        %1562 = vmatpush1.bf16.xpose.msra.mxu0 0
        %1563 = vmatprep.subr.bf16.mxu0 0
        %1564 = vmatpush1.bf16.xpose.msra.mxu0 0
        %1565 = vmatprep.subr.bf16.mxu0 0
        %1566 = vmatpush1.bf16.xpose.msra.mxu0 0
        %1567 = vmatprep.subr.bf16.mxu0 0
        %1568 = vmatpush1.bf16.xpose.msra.mxu0 0
        %1569 = vmatprep.subr.bf16.mxu0 0
        %1570 = vmatpush1.bf16.xpose.msra.mxu0 0
        %1571 = vmatprep.subr.bf16.mxu0 0
        %1572 = vmatpush1.bf16.xpose.msra.mxu0 0
        %1573 = vmatprep.subr.bf16.mxu0 0
        %1574 = vmatpush1.bf16.xpose.msra.mxu0 0
        %1575 = vmatprep.subr.bf16.mxu0 0
        %1576 = vmatpush1.bf16.xpose.msra.mxu0 0
        %1577 = vmatprep.mubr.bf16.mxu0 0
        %1578 = vmatmul.mubr.bf16.gmra.mrb[0].mxu0 %v1540
        %v1579 = vpop.f32.mrb[0].mxu0
        %v1580 = vadd.f32 %v1132, %v1579
        %v1581 = vpop.f32.mrb[0].mxu0
        %v1582 = vpop.f32.mrb[0].mxu0
        %v1583 = vpop.f32.mrb[0].mxu0
        %1584 = vdwg.mxu0
        %v1585 = vsel %vm1316, %v1580, -inf
        %1586 = vmax.xlane.f32.xlu0 %v1585
        %v1587 = vpop.xlane.xlu0 %1586
        %v1588 = vsub.f32 %v1580, %v1587
        %v1589 = vmul.f32 %v1588, 1.442695
        %v1590 = vpow.pop %v1589
        %v1591 = vsel %vm1316, %v1590, 0.0
        %1592 = vadd.xlane.f32.xlu0 %v1591
        %v1593 = vpop.xlane.xlu0 %1592
        %v1594 = vrcp.pop %v1593
        %v1595 = vmul.f32 %v1590, %v1594
        %v1596 = vpack.c.bf16 %v1595, %v1595
        %1597 = vrot.lane.b32.xlu0 %v1315, 112
        %v1598 = vpop.permute.xlu0 %1597
        %v1600 = vsel %vm1316, %v1596, 0
        %v1603 = vsel %vm1378, %v1598, 0
        %1605 = vmatprep.subr.bf16.mxu0 0
        %1606 = vmatpush1.bf16.msra.mxu0 %v1603
        %1607 = vmatprep.subr.bf16.mxu0 0
        %1608 = vmatpush1.bf16.msra.mxu0 0
        %1609 = vmatprep.subr.bf16.mxu0 0
        %1610 = vmatpush1.bf16.msra.mxu0 0
        %1611 = vmatprep.subr.bf16.mxu0 0
        %1612 = vmatpush1.bf16.msra.mxu0 0
        %1613 = vmatprep.subr.bf16.mxu0 0
        %1614 = vmatpush1.bf16.msra.mxu0 0
        %1615 = vmatprep.subr.bf16.mxu0 0
        %1616 = vmatpush1.bf16.msra.mxu0 0
        %1617 = vmatprep.subr.bf16.mxu0 0
        %1618 = vmatpush1.bf16.msra.mxu0 0
        %1619 = vmatprep.subr.bf16.mxu0 0
        %1620 = vmatpush1.bf16.msra.mxu0 0
        %1621 = vmatprep.subr.bf16.mxu0 0
        %1622 = vmatpush1.bf16.msra.mxu0 0
        %1623 = vmatprep.subr.bf16.mxu0 0
        %1624 = vmatpush1.bf16.msra.mxu0 0
        %1625 = vmatprep.subr.bf16.mxu0 0
        %1626 = vmatpush1.bf16.msra.mxu0 0
        %1627 = vmatprep.subr.bf16.mxu0 0
        %1628 = vmatpush1.bf16.msra.mxu0 0
        %1629 = vmatprep.subr.bf16.mxu0 0
        %1630 = vmatpush1.bf16.msra.mxu0 0
        %1631 = vmatprep.subr.bf16.mxu0 0
        %1632 = vmatpush1.bf16.msra.mxu0 0
        %1633 = vmatprep.subr.bf16.mxu0 0
        %1634 = vmatpush1.bf16.msra.mxu0 0
        %1635 = vmatprep.subr.bf16.mxu0 0
        %1636 = vmatpush1.bf16.msra.mxu0 0
        %1637 = vmatprep.mubr.bf16.mxu0 0
        %1638 = vmatmul.mubr.bf16.gmra.mrb[0].mxu0 %v1600
        %v1639 = vpop.f32.mrb[0].mxu0
        %v1640 = vadd.f32 0.0, %v1639
        %v1641 = vpop.f32.mrb[0].mxu0
        %v1642 = vpop.f32.mrb[0].mxu0
        %v1643 = vpop.f32.mrb[0].mxu0
        %1644 = vdwg.mxu0
        %1645 = vrot.lane.b32.xlu0 %v1313, 104
        %v1646 = vpop.permute.xlu0 %1645
        %1647 = vrot.lane.b32.xlu0 %v1314, 104
        %v1648 = vpop.permute.xlu0 %1647
        %v1650 = vsel %vm1316, %v1646, 0
        %v1653 = vsel %vm1316, %v1648, 0
        %1655 = vmatprep.subr.bf16.mxu0 0
        %1656 = vmatpush1.bf16.xpose.msra.mxu0 %v1653
        %1657 = vmatprep.subr.bf16.mxu0 0
        %1658 = vmatpush1.bf16.xpose.msra.mxu0 0
        %1659 = vmatprep.subr.bf16.mxu0 0
        %1660 = vmatpush1.bf16.xpose.msra.mxu0 0
        %1661 = vmatprep.subr.bf16.mxu0 0
        %1662 = vmatpush1.bf16.xpose.msra.mxu0 0
        %1663 = vmatprep.subr.bf16.mxu0 0
        %1664 = vmatpush1.bf16.xpose.msra.mxu0 0
        %1665 = vmatprep.subr.bf16.mxu0 0
        %1666 = vmatpush1.bf16.xpose.msra.mxu0 0
        %1667 = vmatprep.subr.bf16.mxu0 0
        %1668 = vmatpush1.bf16.xpose.msra.mxu0 0
        %1669 = vmatprep.subr.bf16.mxu0 0
        %1670 = vmatpush1.bf16.xpose.msra.mxu0 0
        %1671 = vmatprep.subr.bf16.mxu0 0
        %1672 = vmatpush1.bf16.xpose.msra.mxu0 0
        %1673 = vmatprep.subr.bf16.mxu0 0
        %1674 = vmatpush1.bf16.xpose.msra.mxu0 0
        %1675 = vmatprep.subr.bf16.mxu0 0
        %1676 = vmatpush1.bf16.xpose.msra.mxu0 0
        %1677 = vmatprep.subr.bf16.mxu0 0
        %1678 = vmatpush1.bf16.xpose.msra.mxu0 0
        %1679 = vmatprep.subr.bf16.mxu0 0
        %1680 = vmatpush1.bf16.xpose.msra.mxu0 0
        %1681 = vmatprep.subr.bf16.mxu0 0
        %1682 = vmatpush1.bf16.xpose.msra.mxu0 0
        %1683 = vmatprep.subr.bf16.mxu0 0
        %1684 = vmatpush1.bf16.xpose.msra.mxu0 0
        %1685 = vmatprep.subr.bf16.mxu0 0
        %1686 = vmatpush1.bf16.xpose.msra.mxu0 0
        %1687 = vmatprep.mubr.bf16.mxu0 0
        %1688 = vmatmul.mubr.bf16.gmra.mrb[0].mxu0 %v1650
        %v1689 = vpop.f32.mrb[0].mxu0
        %v1690 = vadd.f32 %v1132, %v1689
        %v1691 = vpop.f32.mrb[0].mxu0
        %v1692 = vpop.f32.mrb[0].mxu0
        %v1693 = vpop.f32.mrb[0].mxu0
        %1694 = vdwg.mxu0
        %v1695 = vsel %vm1316, %v1690, -inf
        %1696 = vmax.xlane.f32.xlu0 %v1695
        %v1697 = vpop.xlane.xlu0 %1696
        %v1698 = vsub.f32 %v1690, %v1697
        %v1699 = vmul.f32 %v1698, 1.442695
        %v1700 = vpow.pop %v1699
        %v1701 = vsel %vm1316, %v1700, 0.0
        %1702 = vadd.xlane.f32.xlu0 %v1701
        %v1703 = vpop.xlane.xlu0 %1702
        %v1704 = vrcp.pop %v1703
        %v1705 = vmul.f32 %v1700, %v1704
        %v1706 = vpack.c.bf16 %v1705, %v1705
        %1707 = vrot.lane.b32.xlu0 %v1315, 104
        %v1708 = vpop.permute.xlu0 %1707
        %v1710 = vsel %vm1316, %v1706, 0
        %v1713 = vsel %vm1378, %v1708, 0
        %1715 = vmatprep.subr.bf16.mxu0 0
        %1716 = vmatpush1.bf16.msra.mxu0 %v1713
        %1717 = vmatprep.subr.bf16.mxu0 0
        %1718 = vmatpush1.bf16.msra.mxu0 0
        %1719 = vmatprep.subr.bf16.mxu0 0
        %1720 = vmatpush1.bf16.msra.mxu0 0
        %1721 = vmatprep.subr.bf16.mxu0 0
        %1722 = vmatpush1.bf16.msra.mxu0 0
        %1723 = vmatprep.subr.bf16.mxu0 0
        %1724 = vmatpush1.bf16.msra.mxu0 0
        %1725 = vmatprep.subr.bf16.mxu0 0
        %1726 = vmatpush1.bf16.msra.mxu0 0
        %1727 = vmatprep.subr.bf16.mxu0 0
        %1728 = vmatpush1.bf16.msra.mxu0 0
        %1729 = vmatprep.subr.bf16.mxu0 0
        %1730 = vmatpush1.bf16.msra.mxu0 0
        %1731 = vmatprep.subr.bf16.mxu0 0
        %1732 = vmatpush1.bf16.msra.mxu0 0
        %1733 = vmatprep.subr.bf16.mxu0 0
        %1734 = vmatpush1.bf16.msra.mxu0 0
        %1735 = vmatprep.subr.bf16.mxu0 0
        %1736 = vmatpush1.bf16.msra.mxu0 0
        %1737 = vmatprep.subr.bf16.mxu0 0
        %1738 = vmatpush1.bf16.msra.mxu0 0
        %1739 = vmatprep.subr.bf16.mxu0 0
        %1740 = vmatpush1.bf16.msra.mxu0 0
        %1741 = vmatprep.subr.bf16.mxu0 0
        %1742 = vmatpush1.bf16.msra.mxu0 0
        %1743 = vmatprep.subr.bf16.mxu0 0
        %1744 = vmatpush1.bf16.msra.mxu0 0
        %1745 = vmatprep.subr.bf16.mxu0 0
        %1746 = vmatpush1.bf16.msra.mxu0 0
        %1747 = vmatprep.mubr.bf16.mxu0 0
        %1748 = vmatmul.mubr.bf16.gmra.mrb[0].mxu0 %v1710
        %v1749 = vpop.f32.mrb[0].mxu0
        %v1750 = vadd.f32 0.0, %v1749
        %v1751 = vpop.f32.mrb[0].mxu0
        %v1752 = vpop.f32.mrb[0].mxu0
        %v1753 = vpop.f32.mrb[0].mxu0
        %1754 = vdwg.mxu0
        %1756 = vrot.lane.b32.xlu0 %v1530, 8
        %v1757 = vpop.permute.xlu0 %1756
        %1760 = vrot.lane.b32.xlu0 %v1640, 16
        %v1761 = vpop.permute.xlu0 %1760
        %1764 = vrot.lane.b32.xlu0 %v1750, 24
        %v1765 = vpop.permute.xlu0 %1764
        %v1767 = vsel %vm1316, %v1417, %v1757
        %vm1768 = vcmask 130048
        %v1769 = vsel %vm1768, %v1767, %v1761
        %vm1770 = vcmask 195584
        %v1771 = vsel %vm1770, %v1769, %v1765
        %v1772 = vpack.c.bf16 %v1771, %v1771
        %v1774 = vlaneseq
        %v1775 = vshrl.u32 %v1774, 7
        %v1776 = vsub.s32 0, %v1775
        %v1777 = vrot.slane %v1102, %v1776
        %v1783 = vunpack.c.l.b16 %v1098
        %v1784 = vunpack.c.l.b16 %v1099
        %v1785 = vunpack.c.l.b16 %v1100
        %v1786 = vunpack.c.l.b16 %v1101
        %v1787 = vpack.c.b16 %v1784, %v1783
        %v1788 = vpack.c.b16 %v1786, %v1785
        %v1792 = vsel %vm1153, %v1772, 0
        %1794 = vmatprep.subr.bf16.mxu0 0
        %1795 = vmatpush1.bf16.msra.mxu0 %v1787
        %1796 = vmatprep.subr.bf16.mxu0 0
        %1797 = vmatpush1.bf16.msra.mxu0 %v1788
        %1798 = vmatprep.subr.bf16.mxu0 0
        %1799 = vmatpush1.bf16.msra.mxu0 0
        %1800 = vmatprep.subr.bf16.mxu0 0
        %1801 = vmatpush1.bf16.msra.mxu0 0
        %1802 = vmatprep.subr.bf16.mxu0 0
        %1803 = vmatpush1.bf16.msra.mxu0 0
        %1804 = vmatprep.subr.bf16.mxu0 0
        %1805 = vmatpush1.bf16.msra.mxu0 0
        %1806 = vmatprep.subr.bf16.mxu0 0
        %1807 = vmatpush1.bf16.msra.mxu0 0
        %1808 = vmatprep.subr.bf16.mxu0 0
        %1809 = vmatpush1.bf16.msra.mxu0 0
        %1810 = vmatprep.subr.bf16.mxu0 0
        %1811 = vmatpush1.bf16.msra.mxu0 0
        %1812 = vmatprep.subr.bf16.mxu0 0
        %1813 = vmatpush1.bf16.msra.mxu0 0
        %1814 = vmatprep.subr.bf16.mxu0 0
        %1815 = vmatpush1.bf16.msra.mxu0 0
        %1816 = vmatprep.subr.bf16.mxu0 0
        %1817 = vmatpush1.bf16.msra.mxu0 0
        %1818 = vmatprep.subr.bf16.mxu0 0
        %1819 = vmatpush1.bf16.msra.mxu0 0
        %1820 = vmatprep.subr.bf16.mxu0 0
        %1821 = vmatpush1.bf16.msra.mxu0 0
        %1822 = vmatprep.subr.bf16.mxu0 0
        %1823 = vmatpush1.bf16.msra.mxu0 0
        %1824 = vmatprep.subr.bf16.mxu0 0
        %1825 = vmatpush1.bf16.msra.mxu0 0
        %1826 = vmatprep.mubr.bf16.mxu0 0
        %1827 = vmatmul.mubr.bf16.gmra.mrb[0].mxu0 %v1792
        %v1828 = vpop.f32.mrb[0].mxu0
        %v1829 = vadd.f32 %v1777, %v1828
        %v1830 = vpop.f32.mrb[0].mxu0
        %v1831 = vpop.f32.mrb[0].mxu0
        %v1832 = vpop.f32.mrb[0].mxu0
        %1833 = vdwg.mxu0
        %v1834 = vadd.f32 %v1082, %v1829
        %v1835 = vsel %vm1153, %v1834, 0.0
        %1836 = vadd.xlane.f32.xlu0 %v1835
        %v1837 = vpop.xlane.xlu0 %1836
        %v1838 = vrcp.pop 32.0
        %v1839 = vmul.f32 %v1837, %v1838
        %v1840 = vsub.f32 %v1834, %v1839
        %v1841 = vmul.f32 %v1840, %v1840
        %v1842 = vsel %vm1153, %v1841, 0.0
        %1843 = vadd.xlane.f32.xlu0 %v1842
        %v1844 = vpop.xlane.xlu0 %1843
        %v1845 = vmul.f32 %v1844, %v1838
        %v1846 = vadd.f32 %v1845, 1e-05
        %v1847 = vrsqrt.pop %v1846
        %v1848 = vmul.f32 %v1840, %v1847
        %v1850 = vlaneseq
        %v1851 = vshrl.u32 %v1850, 7
        %v1852 = vsub.s32 0, %v1851
        %v1853 = vrot.slane %v1103, %v1852
        %v1855 = vmul.f32 %v1848, %v1853
        %v1857 = vlaneseq
        %v1858 = vshrl.u32 %v1857, 7
        %v1859 = vsub.s32 0, %v1858
        %v1860 = vrot.slane %v1104, %v1859
        %v1862 = vadd.f32 %v1855, %v1860
        %v1863 = vpack.c.bf16 %v1862, %v1862
        %v1865 = vlaneseq
        %v1866 = vshrl.u32 %v1865, 7
        %v1867 = vsub.s32 0, %v1866
        %v1868 = vrot.slane %v1109, %v1867
        %v1874 = vunpack.c.l.b16 %v1105
        %v1875 = vunpack.c.l.b16 %v1106
        %v1876 = vunpack.c.l.b16 %v1107
        %v1877 = vunpack.c.l.b16 %v1108
        %v1878 = vpack.c.b16 %v1875, %v1874
        %v1879 = vpack.c.b16 %v1877, %v1876
        %v1883 = vsel %vm1153, %v1863, 0
        %1885 = vmatprep.subr.bf16.mxu0 0
        %1886 = vmatpush1.bf16.msra.mxu0 %v1878
        %1887 = vmatprep.subr.bf16.mxu0 0
        %1888 = vmatpush1.bf16.msra.mxu0 %v1879
        %1889 = vmatprep.subr.bf16.mxu0 0
        %1890 = vmatpush1.bf16.msra.mxu0 0
        %1891 = vmatprep.subr.bf16.mxu0 0
        %1892 = vmatpush1.bf16.msra.mxu0 0
        %1893 = vmatprep.subr.bf16.mxu0 0
        %1894 = vmatpush1.bf16.msra.mxu0 0
        %1895 = vmatprep.subr.bf16.mxu0 0
        %1896 = vmatpush1.bf16.msra.mxu0 0
        %1897 = vmatprep.subr.bf16.mxu0 0
        %1898 = vmatpush1.bf16.msra.mxu0 0
        %1899 = vmatprep.subr.bf16.mxu0 0
        %1900 = vmatpush1.bf16.msra.mxu0 0
        %1901 = vmatprep.subr.bf16.mxu0 0
        %1902 = vmatpush1.bf16.msra.mxu0 0
        %1903 = vmatprep.subr.bf16.mxu0 0
        %1904 = vmatpush1.bf16.msra.mxu0 0
        %1905 = vmatprep.subr.bf16.mxu0 0
        %1906 = vmatpush1.bf16.msra.mxu0 0
        %1907 = vmatprep.subr.bf16.mxu0 0
        %1908 = vmatpush1.bf16.msra.mxu0 0
        %1909 = vmatprep.subr.bf16.mxu0 0
        %1910 = vmatpush1.bf16.msra.mxu0 0
        %1911 = vmatprep.subr.bf16.mxu0 0
        %1912 = vmatpush1.bf16.msra.mxu0 0
        %1913 = vmatprep.subr.bf16.mxu0 0
        %1914 = vmatpush1.bf16.msra.mxu0 0
        %1915 = vmatprep.subr.bf16.mxu0 0
        %1916 = vmatpush1.bf16.msra.mxu0 0
        %1917 = vmatprep.mubr.bf16.mxu0 0
        %1918 = vmatmul.mubr.bf16.gmra.mrb[0].mxu0 %v1883
        %v1919 = vpop.f32.mrb[0].mxu0
        %v1920 = vadd.f32 %v1868, %v1919
        %v1921 = vpop.f32.mrb[0].mxu0
        %v1922 = vpop.f32.mrb[0].mxu0
        %v1923 = vpop.f32.mrb[0].mxu0
        %1924 = vdwg.mxu0
        %v1925 = vmax.f32 %v1920, 0.0
        %v1926 = vpack.c.bf16 %v1925, %v1925
        %v1928 = vlaneseq
        %v1929 = vshrl.u32 %v1928, 7
        %v1930 = vsub.s32 0, %v1929
        %v1931 = vrot.slane %v1126, %v1930
        %v1949 = vunpack.c.l.b16 %v1110
        %v1950 = vunpack.c.l.b16 %v1111
        %v1951 = vunpack.c.l.b16 %v1112
        %v1952 = vunpack.c.l.b16 %v1113
        %v1953 = vunpack.c.l.b16 %v1114
        %v1954 = vunpack.c.l.b16 %v1115
        %v1955 = vunpack.c.l.b16 %v1116
        %v1956 = vunpack.c.l.b16 %v1117
        %v1957 = vunpack.c.l.b16 %v1118
        %v1958 = vunpack.c.l.b16 %v1119
        %v1959 = vunpack.c.l.b16 %v1120
        %v1960 = vunpack.c.l.b16 %v1121
        %v1961 = vunpack.c.l.b16 %v1122
        %v1962 = vunpack.c.l.b16 %v1123
        %v1963 = vunpack.c.l.b16 %v1124
        %v1964 = vunpack.c.l.b16 %v1125
        %v1965 = vpack.c.b16 %v1950, %v1949
        %v1966 = vpack.c.b16 %v1952, %v1951
        %v1967 = vpack.c.b16 %v1954, %v1953
        %v1968 = vpack.c.b16 %v1956, %v1955
        %v1969 = vpack.c.b16 %v1958, %v1957
        %v1970 = vpack.c.b16 %v1960, %v1959
        %v1971 = vpack.c.b16 %v1962, %v1961
        %v1972 = vpack.c.b16 %v1964, %v1963
        %1981 = vmatprep.subr.bf16.mxu0 0
        %1982 = vmatpush1.bf16.msra.mxu0 %v1965
        %1983 = vmatprep.subr.bf16.mxu0 0
        %1984 = vmatpush1.bf16.msra.mxu0 %v1966
        %1985 = vmatprep.subr.bf16.mxu0 0
        %1986 = vmatpush1.bf16.msra.mxu0 %v1967
        %1987 = vmatprep.subr.bf16.mxu0 0
        %1988 = vmatpush1.bf16.msra.mxu0 %v1968
        %1989 = vmatprep.subr.bf16.mxu0 0
        %1990 = vmatpush1.bf16.msra.mxu0 %v1969
        %1991 = vmatprep.subr.bf16.mxu0 0
        %1992 = vmatpush1.bf16.msra.mxu0 %v1970
        %1993 = vmatprep.subr.bf16.mxu0 0
        %1994 = vmatpush1.bf16.msra.mxu0 %v1971
        %1995 = vmatprep.subr.bf16.mxu0 0
        %1996 = vmatpush1.bf16.msra.mxu0 %v1972
        %1997 = vmatprep.subr.bf16.mxu0 0
        %1998 = vmatpush1.bf16.msra.mxu0 0
        %1999 = vmatprep.subr.bf16.mxu0 0
        %2000 = vmatpush1.bf16.msra.mxu0 0
        %2001 = vmatprep.subr.bf16.mxu0 0
        %2002 = vmatpush1.bf16.msra.mxu0 0
        %2003 = vmatprep.subr.bf16.mxu0 0
        %2004 = vmatpush1.bf16.msra.mxu0 0
        %2005 = vmatprep.subr.bf16.mxu0 0
        %2006 = vmatpush1.bf16.msra.mxu0 0
        %2007 = vmatprep.subr.bf16.mxu0 0
        %2008 = vmatpush1.bf16.msra.mxu0 0
        %2009 = vmatprep.subr.bf16.mxu0 0
        %2010 = vmatpush1.bf16.msra.mxu0 0
        %2011 = vmatprep.subr.bf16.mxu0 0
        %2012 = vmatpush1.bf16.msra.mxu0 0
        %2013 = vmatprep.mubr.bf16.mxu0 0
        %2014 = vmatmul.mubr.bf16.gmra.mrb[0].mxu0 %v1926
        %v2015 = vpop.f32.mrb[0].mxu0
        %v2016 = vadd.f32 %v1931, %v2015
        %v2017 = vpop.f32.mrb[0].mxu0
        %v2018 = vpop.f32.mrb[0].mxu0
        %v2019 = vpop.f32.mrb[0].mxu0
        %2020 = vdwg.mxu0
        %v2021 = vadd.f32 %v1862, %v2016
        %v2022 = vsel %vm1153, %v2021, 0.0
        %2023 = vadd.xlane.f32.xlu0 %v2022
        %v2024 = vpop.xlane.xlu0 %2023
        %v2025 = vmul.f32 %v2024, %v1838
        %v2026 = vsub.f32 %v2021, %v2025
        %v2027 = vmul.f32 %v2026, %v2026
        %v2028 = vsel %vm1153, %v2027, 0.0
        %2029 = vadd.xlane.f32.xlu0 %v2028
        %v2030 = vpop.xlane.xlu0 %2029
        %v2031 = vmul.f32 %v2030, %v1838
        %v2032 = vadd.f32 %v2031, 1e-05
        %v2033 = vrsqrt.pop %v2032
        %v2034 = vmul.f32 %v2026, %v2033
        %v2035 = vmul.f32 %v2034, %v1853
        %v2036 = vadd.f32 %v2035, %v1860
        %2037 = vst.msk [vmem:[#allocation2] sm:$0xff] %vm1153, %v2036
        %p2038 = scmp.eq.s32.totalorder %s62, 1
        // Predicated region
        $region153: #{tpu_custom_call.1} parent=83 // pred_check
          %p2039 = pneg %p2038
        $region154: #{tpu_custom_call.1} parent=83 // pred_check_branch
          %2041 = sbr.rel (%p2039) target = $region156
        $region155: #{tpu_custom_call.1} parent=83 // pred_region
          %v2042 = vld [vmem:[#allocation2] sm:$0xff]
          %2043 = vst.msk [vmem:[%s1073] sm:$0xff] %vm1153, %v2042
        $region156: #{tpu_custom_call.1} parent=83 // pred_fallthru
          _
        %s2044 = sand.u32 %s493, 1
        %s2045 = scalar_lea.sflag [#allocation5], %s2044
        %s2046 = sand.u32 %s493, 1
        %s2047 = smul.addr %s2046, 8
        %s2048 = scalar_lea.vmem [#allocation29], %s2047
        // Predicated region
        $region157: #{tpu_custom_call.1} parent=83 // pred_check
          %p2049 = pneg %p503
        $region158: #{tpu_custom_call.1} parent=83 // pred_check_branch
          %2051 = sbr.rel (%p2049) target = $region160
        $region159: #{tpu_custom_call.1} parent=83 // pred_region
          %s2053 = ssub.s32 128, 128
          %2054 = vsyncadd %s2045, %s2053
          %s2055 = smul.addr %s61, 128
          %s2056 = scalar_lea.hbm %s16, %s2055
          %s2058 = sshll.u32 %s2048, 4
          %s2059 = int_to_ptr.vmem [resolvable:$true] %s2058
          %2061 = dma.vmem_to_hbm [thread:$0]  %s2059, 128, %s2056, %s2045
        $region160: #{tpu_custom_call.1} parent=83 // pred_fallthru
          _
      $region84: #{tpu_custom_call.1} parent=5 // pred_fallthru
        _
      %p2062 = scmp.le.s32.totalorder 2, %s52
      // Predicated region
      $region161: #{tpu_custom_call.1} parent=5 // pred_check
        %p2063 = pneg %p2062
      $region162: #{tpu_custom_call.1} parent=5 // pred_check_branch
        %2065 = sbr.rel (%p2063) target = $region164
      $region163: #{tpu_custom_call.1} parent=5 // pred_region
        %s2066 = ssub.s32 %s52, 2
        // Predicated region
        $region165: #{tpu_custom_call.1} parent=163 // pred_check
          %p2067 = pneg %p509
        $region166: #{tpu_custom_call.1} parent=163 // pred_check_branch
          %2069 = sbr.rel (%p2067) target = $region168
        $region167: #{tpu_custom_call.1} parent=163 // pred_region
          %s2070 = sand.u32 %s494, 1
          %s2071 = scalar_lea.sflag [#allocation5], %s2070
          %s2072 = sand.u32 %s494, 1
          %s2073 = smul.addr %s2072, 8
          %s2074 = scalar_lea.vmem [#allocation29], %s2073
          %2075 = dma.done %s2071, 128
        $region168: #{tpu_custom_call.1} parent=163 // pred_fallthru
          _
      $region164: #{tpu_custom_call.1} parent=5 // pred_fallthru
        _
    $region6: #{tpu_custom_call.1} parent=1 // loop_footer
      %s56 = sadd.s32 1, %s52
    $region7: #{tpu_custom_call.1} parent=1 // loop_footer_branch
      %51 = sbr.rel target = $region3
    $region8: #{tpu_custom_call.1} parent=1 // loop_exit
      _
    %2076 = vsyncpa [#allocation4], 1
    %s2077 = scalar_lea.sflag [#allocation4], 1
    %2078 = vsyncpa %s2077, 1
    %2079 = vsyncpa [#allocation7], 1
    %s2080 = scalar_lea.sflag [#allocation7], 1
    %2081 = vsyncpa %s2080, 1
    %2082 = vsyncpa [#allocation10], 1
    %s2083 = scalar_lea.sflag [#allocation10], 1
    %2084 = vsyncpa %s2083, 1
    %2085 = vsyncpa [#allocation13], 1
    %s2086 = scalar_lea.sflag [#allocation13], 1
    %2087 = vsyncpa %s2086, 1
    %2088 = vsyncpa [#allocation16], 1
    %s2089 = scalar_lea.sflag [#allocation16], 1
    %2090 = vsyncpa %s2089, 1
    %2091 = vsyncpa [#allocation19], 1
    %s2092 = scalar_lea.sflag [#allocation19], 1
    %2093 = vsyncpa %s2092, 1
    %2094 = vsyncpa [#allocation22], 1
    %s2095 = scalar_lea.sflag [#allocation22], 1
    %2096 = vsyncpa %s2095, 1
    %2097 = vsyncpa [#allocation25], 1
    %s2098 = scalar_lea.sflag [#allocation25], 1
    %2099 = vsyncpa %s2098, 1
    %2100 = vsyncpa [#allocation28], 1
    %s2101 = scalar_lea.sflag [#allocation28], 1
    %2102 = vsyncpa %s2101, 1
    %2103 = vsyncpa [#allocation5], 1
    %s2104 = scalar_lea.sflag [#allocation5], 1
    %2105 = vsyncpa %s2104, 1

</llo_original>
